<compile_context>
chip_gen: v6e
topology: v6e:2x2x1
jax: 0.10.0
libtpu: 0.0.40
codegen_flags: <defaults>
</compile_context>

<pallas_src>
import jax
import jax.numpy as jnp
import numpy as np
from jax.experimental import pallas as pl
from jax.experimental.pallas import tpu as pltpu


def _round_up(x, m):
    return (x + m - 1) // m * m


def _make_kernel(*, kernel_size, dilation, pad_l, halo_l, halo_r, t_tile,
                 w_blk, cc_pad, cc_real, t_real, eps=1e-5):
    inv_cc = 1.0 / float(cc_real)

    def kernel(x_hbm, w1_ref, b1_ref, a1_ref, g1_ref, be1_ref,
               wd_ref, bd_ref, a2_ref, g2_ref, be2_ref, ws_ref, bs_ref,
               o_ref, xwin_ref, ystage_ref, dma_sem):
        b = pl.program_id(0)
        t = pl.program_id(1)
        n_t = pl.num_programs(1)

        # SMEM scalar reads hoisted ahead of any DMA wait (keeps sst->sld
        # store/load forwarding intact).
        a1 = a1_ref[0]
        a2 = a2_ref[0]

        slot = t & 1
        nslot = (t + 1) & 1

        def issue(tt, s):
            start = pl.multiple_of(tt * t_tile, t_tile)
            pltpu.make_async_copy(
                x_hbm.at[b, pl.ds(start, w_blk), :],
                xwin_ref.at[s], dma_sem.at[s]).start()

        # Prime this row's first window (once per (b, :) row, so it also works
        # when the batch axis is sharded across TensorCores).
        @pl.when(t == 0)
        def _():
            issue(0, 0)

        # Prefetch the next window of this row; the time axis is "arbitrary"
        # (sequential on the executing core), so step (b, t+1) is the one that
        # will consume it.  Its HBM latency hides behind this step's compute.
        @pl.when(t + 1 < n_t)
        def _():
            issue(t + 1, nslot)

        # Wait only for this step's window.
        pltpu.make_async_copy(
            x_hbm.at[b, pl.ds(pl.multiple_of(t * t_tile, t_tile), w_blk), :],
            xwin_ref.at[slot], dma_sem.at[slot]).wait()

        def cln(v, g, be):
            # Two-pass cLN: padded lanes of v are exactly zero, so the mean
            # over cc_pad lanes divided by cc_real is exact; the centered
            # square is masked to the real lanes only when padding exists.
            mean = jnp.sum(v, axis=-1, keepdims=True) * inv_cc
            d = v - mean
            dsq = d * d
            if cc_pad != cc_real:
                lane = jax.lax.broadcasted_iota(jnp.int32, (1, cc_pad), 1)
                dsq = jnp.where(lane < cc_real, dsq, 0.0)
            var = jnp.sum(dsq, axis=-1, keepdims=True) * inv_cc
            # gamma/beta are zero on padded lanes -> output stays exactly zero.
            return d * (jax.lax.rsqrt(var + eps) * g) + be

        # ---- conv1x1 (bf16 MXU, f32 acc) + PReLU1 + cLN1 --------------------
        y = jnp.dot(xwin_ref[slot], w1_ref[...],
                    preferred_element_type=jnp.float32)
        y = y + b1_ref[...]
        y = jnp.where(y >= 0, y, a1 * y)
        y = cln(y, g1_ref[...], be1_ref[...])

        # Stage the normalized window once in bf16 VMEM: bounds vreg/spill
        # pressure and lets the depthwise taps re-load cheap slices.
        ystage_ref[...] = y.astype(jnp.bfloat16)

        # The depthwise conv must see zeros outside the real sequence
        # (PyTorch Conv1d zero-pads the *normalized* signal).  Only tiles
        # whose window actually crosses t=0 or t>=t_real pay for the mask.
        start_t = t * t_tile
        needs_mask = (start_t < halo_l) | (start_t + t_tile + halo_r > t_real)

        @pl.when(needs_mask)
        def _():
            row_t = (jax.lax.broadcasted_iota(jnp.int32, (w_blk, 1), 0)
                     + (start_t - halo_l))
            ok = (row_t >= 0) & (row_t < t_real)
            ystage_ref[...] = jnp.where(ok, ystage_ref[...],
                                        0.0).astype(jnp.bfloat16)

        # ---- depthwise dilated conv over time: static slices of the stage --
        acc = jnp.zeros((t_tile, cc_pad), jnp.float32)
        for k in range(kernel_size):
            off = halo_l - pad_l + k * dilation
            tap = ystage_ref[off:off + t_tile, :].astype(jnp.float32)
            acc = acc + wd_ref[k:k + 1, :] * tap
        y = acc + bd_ref[...]

        # ---- PReLU2 + cLN2 + sconv (bf16 MXU) + residual --------------------
        y = jnp.where(y >= 0, y, a2 * y)
        y = cln(y, g2_ref[...], be2_ref[...])
        y = jnp.dot(y.astype(jnp.bfloat16), ws_ref[...],
                    preferred_element_type=jnp.float32)
        res = xwin_ref[slot, halo_l:halo_l + t_tile, :].astype(jnp.float32)
        o_ref[...] = (y + bs_ref[...] + res).astype(o_ref.dtype)

    return kernel


def conv1d_block(x_nct, params, *, kernel_size=3, dilation=1, causal=False,
                 t_tile=256, eps=1e-5, out_dtype=jnp.float32):
    """x_nct: [N, Cin, T] (PyTorch layout).  Returns [N, Cin, T] out_dtype."""
    N, Cin, T = x_nct.shape
    Cc = params["w1"].shape[1]

    span = dilation * (kernel_size - 1)
    if causal:
        pad_l, pad_r = span, 0
    else:
        if span % 2 != 0:
            raise ValueError("non-causal path assumes dilation*(K-1) even "
                             "(as the PyTorch module does for residual add)")
        pad_l = pad_r = span // 2

    # lane / sublane friendly sizes
    cin_p = _round_up(Cin, 128)
    cc_p = _round_up(Cc, 128)
    t_tile = _round_up(min(t_tile, _round_up(T, 8)), 8)
    n_t = -(-T // t_tile)
    t_pad = n_t * t_tile
    halo_l = _round_up(pad_l, 8)
    halo_r = _round_up(pad_r, 8)
    w_blk = halo_l + t_tile + halo_r

    # Layout glue: NCT -> NTC, bf16 activation stream, zero halo + tile-rounding
    # padding on time, zero padding of channels to a 128-lane multiple.
    x_ntc = jnp.transpose(x_nct, (0, 2, 1)).astype(jnp.bfloat16)
    x_pad = jnp.pad(x_ntc, ((0, 0),
                            (halo_l, halo_r + t_pad - T),
                            (0, cin_p - Cin)))

    def pad2(a, rows, cols, dtype=jnp.float32):
        return jnp.pad(a, ((0, rows - a.shape[0]),
                           (0, cols - a.shape[1]))).astype(dtype)

    w1 = pad2(params["w1"], cin_p, cc_p, jnp.bfloat16)
    ws = pad2(params["ws"], cc_p, cin_p, jnp.bfloat16)
    wd = pad2(params["wd"], kernel_size, cc_p)
    b1 = pad2(params["b1"], 1, cc_p)
    g1 = pad2(params["g1"], 1, cc_p)
    be1 = pad2(params["be1"], 1, cc_p)
    bd = pad2(params["bd"], 1, cc_p)
    g2 = pad2(params["g2"], 1, cc_p)
    be2 = pad2(params["be2"], 1, cc_p)
    bs = pad2(params["bs"], 1, cin_p)
    a1 = params["a1"].reshape((1,)).astype(jnp.float32)
    a2 = params["a2"].reshape((1,)).astype(jnp.float32)

    kernel = _make_kernel(kernel_size=kernel_size, dilation=dilation,
                          pad_l=pad_l, halo_l=halo_l, halo_r=halo_r,
                          t_tile=t_tile, w_blk=w_blk, cc_pad=cc_p, cc_real=Cc,
                          t_real=T, eps=eps)

    def vmem_full(shape):
        nd = len(shape)
        return pl.BlockSpec(shape, lambda b, t: (0,) * nd)

    smem_spec = pl.BlockSpec(memory_space=pltpu.MemorySpace.SMEM)

    grid_spec = pltpu.PrefetchScalarGridSpec(
        num_scalar_prefetch=0,
        grid=(N, n_t),
        in_specs=[
            pl.BlockSpec(memory_space=pl.ANY),          # x stays in HBM (halo DMA)
            vmem_full(w1.shape), vmem_full(b1.shape), smem_spec,
            vmem_full(g1.shape), vmem_full(be1.shape),
            vmem_full(wd.shape), vmem_full(bd.shape), smem_spec,
            vmem_full(g2.shape), vmem_full(be2.shape),
            vmem_full(ws.shape), vmem_full(bs.shape),
        ],
        out_specs=pl.BlockSpec((None, t_tile, cin_p), lambda b, t: (b, t, 0)),
        scratch_shapes=[
            pltpu.VMEM((2, w_blk, cin_p), jnp.bfloat16),   # double-buffered x window
            pltpu.VMEM((w_blk, cc_p), jnp.bfloat16),       # staged cLN1 output
            pltpu.SemaphoreType.DMA((2,)),                 # one sem per slot
        ],
    )

    out_itemsize = jnp.dtype(out_dtype).itemsize
    param_bytes = int(sum(a.nbytes for a in
                          (w1, ws, wd, b1, g1, be1, bd, g2, be2, bs)))
    footprint = (2 * param_bytes                       # double-buffered weight blocks
                 + 2 * t_tile * cin_p * out_itemsize   # output block double buffer
                 + 2 * w_blk * cin_p * 2               # xwin slots (bf16)
                 + w_blk * cc_p * 2)                   # ystage (bf16)
    vmem_limit = min(max(2 * footprint + (6 << 20), 16 << 20), 40 << 20)

    flops = 2 * N * t_pad * cc_p * (2 * cin_p + kernel_size)
    bytes_accessed = (x_pad.size * 2 + N * t_pad * cin_p * out_itemsize
                      + param_bytes)
    cost = pl.CostEstimate(flops=flops, transcendentals=2 * N * t_pad,
                           bytes_accessed=bytes_accessed)

    out_pad = pl.pallas_call(
        kernel,
        out_shape=jax.ShapeDtypeStruct((N, t_pad, cin_p), out_dtype),
        grid_spec=grid_spec,
        compiler_params=pltpu.CompilerParams(
            # batch axis parallel (megacore); time axis arbitrary so the
            # manual next-window prefetch targets the step this core runs next.
            dimension_semantics=("parallel", "arbitrary"),
            vmem_limit_bytes=vmem_limit),
        cost_estimate=cost,
    )(x_pad, w1, b1, a1, g1, be1, wd, bd, a2, g2, be2, ws, bs)

    return jnp.transpose(out_pad[:, :T, :Cin], (0, 2, 1))


def init_params(key, in_channels, conv_channels, kernel_size):
    """Synthetic parameters; shapes match the PyTorch module (transposed)."""
    ks = jax.random.split(key, 10)
    f32 = jnp.float32
    return {
        # conv1x1: torch weight [Cc, Cin, 1] -> stored transposed [Cin, Cc]
        "w1": 0.1 * jax.random.normal(ks[0], (in_channels, conv_channels), f32),
        "b1": 0.1 * jax.random.normal(ks[1], (1, conv_channels), f32),
        "a1": jnp.full((1,), 0.25, f32),                        # nn.PReLU init
        "g1": 1.0 + 0.1 * jax.random.normal(ks[2], (1, conv_channels), f32),
        "be1": 0.1 * jax.random.normal(ks[3], (1, conv_channels), f32),
        # dconv: torch weight [Cc, 1, K] (groups=Cc) -> stored [K, Cc]
        "wd": 0.1 * jax.random.normal(ks[4], (kernel_size, conv_channels), f32),
        "bd": 0.1 * jax.random.normal(ks[5], (1, conv_channels), f32),
        "a2": jnp.full((1,), 0.25, f32),
        "g2": 1.0 + 0.1 * jax.random.normal(ks[6], (1, conv_channels), f32),
        "be2": 0.1 * jax.random.normal(ks[7], (1, conv_channels), f32),
        # sconv: torch weight [Cin, Cc, 1] -> stored transposed [Cc, Cin]
        "ws": 0.1 * jax.random.normal(ks[8], (conv_channels, in_channels), f32),
        "bs": 0.1 * jax.random.normal(ks[9], (1, in_channels), f32),
    }


def ref_forward(x_nct, p, kernel_size, dilation, causal, eps=1e-5):
    """Pure-JAX reference mirroring the PyTorch forward (same bf16 points)."""
    N, Cin, T = x_nct.shape
    x = jnp.transpose(x_nct, (0, 2, 1)).astype(jnp.bfloat16)     # streamed bf16
    y = jnp.einsum("ntc,cd->ntd", x, p["w1"].astype(jnp.bfloat16),
                   preferred_element_type=jnp.float32) + p["b1"]
    y = jnp.where(y >= 0, y, p["a1"] * y)

    def cln(v, g, b):                      # two-pass LayerNorm (torch-style)
        m = v.mean(-1, keepdims=True)
        var = ((v - m) ** 2).mean(-1, keepdims=True)
        return (v - m) / jnp.sqrt(var + eps) * g + b

    y = cln(y, p["g1"], p["be1"])
    # mirror the kernel's bf16 VMEM staging of the normalized activations
    y = y.astype(jnp.bfloat16).astype(jnp.float32)
    span = dilation * (kernel_size - 1)
    pad_l = span if causal else span // 2
    pad_r = 0 if causal else span // 2
    yp = jnp.pad(y, ((0, 0), (pad_l, pad_r), (0, 0)))
    acc = jnp.zeros_like(y)
    for k in range(kernel_size):
        acc = acc + p["wd"][k][None, None, :] * \
            yp[:, k * dilation:k * dilation + T, :]
    y = acc + p["bd"]
    y = jnp.where(y >= 0, y, p["a2"] * y)
    y = cln(y, p["g2"], p["be2"])
    y = jnp.einsum("ntc,cd->ntd", y.astype(jnp.bfloat16),
                   p["ws"].astype(jnp.bfloat16),
                   preferred_element_type=jnp.float32) + p["bs"]
    out = x.astype(jnp.float32) + y
    return jnp.transpose(out, (0, 2, 1))


if __name__ == "__main__":
    key = jax.random.PRNGKey(0)

    # Config 1: non-causal, dilation 2, several time tiles.
    N, Cin, Cc, T = 2, 16, 32, 192
    K, dilation, causal = 3, 2, False
    k1, k2, key = jax.random.split(key, 3)
    x = jax.random.normal(k1, (N, Cin, T), jnp.float32)          # N x C x T
    p = init_params(k2, Cin, Cc, K)
    out = jax.block_until_ready(
        conv1d_block(x, p, kernel_size=K, dilation=dilation, causal=causal,
                     t_tile=64))
    ref = ref_forward(x, p, K, dilation, causal)
    np.testing.assert_allclose(np.asarray(out), np.asarray(ref),
                               rtol=5e-3, atol=5e-3)
    assert out.shape == (N, Cin, T)

    # Config 2: causal, larger dilation, T not a multiple of the time tile.
    N, Cin, Cc, T = 2, 24, 48, 100
    K, dilation, causal = 3, 4, True
    k1, k2, key = jax.random.split(key, 3)
    x = jax.random.normal(k1, (N, Cin, T), jnp.float32)
    p = init_params(k2, Cin, Cc, K)
    out = jax.block_until_ready(
        conv1d_block(x, p, kernel_size=K, dilation=dilation, causal=causal,
                     t_tile=32))
    ref = ref_forward(x, p, K, dilation, causal)
    np.testing.assert_allclose(np.asarray(out), np.asarray(ref),
                               rtol=5e-3, atol=5e-3)

    print("KERNEL_OK")
</pallas_src>

<mosaic_0001>
module attributes {stable_mosaic.version = 11 : i64} {
  func.func @kernel(%arg0: i32, %arg1: i32, %arg2: memref<2x208x128xbf16, #tpu.memory_space<any>>, %arg3: memref<128x128xbf16, #tpu.memory_space<vmem>>, %arg4: memref<1x128xf32, #tpu.memory_space<vmem>>, %arg5: memref<1xf32, #tpu.memory_space<smem>>, %arg6: memref<1x128xf32, #tpu.memory_space<vmem>>, %arg7: memref<1x128xf32, #tpu.memory_space<vmem>>, %arg8: memref<3x128xf32, #tpu.memory_space<vmem>>, %arg9: memref<1x128xf32, #tpu.memory_space<vmem>>, %arg10: memref<1xf32, #tpu.memory_space<smem>>, %arg11: memref<1x128xf32, #tpu.memory_space<vmem>>, %arg12: memref<1x128xf32, #tpu.memory_space<vmem>>, %arg13: memref<128x128xbf16, #tpu.memory_space<vmem>>, %arg14: memref<1x128xf32, #tpu.memory_space<vmem>>, %arg15: memref<1x64x128xf32, #tpu.memory_space<vmem>>, %arg16: memref<2x80x128xbf16, #tpu.memory_space<vmem>>, %arg17: memref<80x128xbf16, #tpu.memory_space<vmem>>, %arg18: memref<2x!tpu.dma_semaphore, #tpu.memory_space<semaphore_mem>>) attributes {dimension_semantics = [#tpu.dimension_semantics<parallel>, #tpu.dimension_semantics<arbitrary>], iteration_bounds = array<i64: 2, 3>, scalar_prefetch = 0 : i64, scratch_operands = 3 : i64, tpu.core_type = #tpu.core_type<tc>, window_params = [{}, {pipeline_mode = #tpu.pipeline_mode<synchronous>, transform_indices = @transform_1, window_bounds = array<i64: 128, 128>}, {pipeline_mode = #tpu.pipeline_mode<synchronous>, transform_indices = @transform_2, window_bounds = array<i64: 1, 128>}, {transform_indices = @transform_3, window_bounds = array<i64: 1>}, {pipeline_mode = #tpu.pipeline_mode<synchronous>, transform_indices = @transform_4, window_bounds = array<i64: 1, 128>}, {pipeline_mode = #tpu.pipeline_mode<synchronous>, transform_indices = @transform_5, window_bounds = array<i64: 1, 128>}, {pipeline_mode = #tpu.pipeline_mode<synchronous>, transform_indices = @transform_6, window_bounds = array<i64: 3, 128>}, {pipeline_mode = #tpu.pipeline_mode<synchronous>, transform_indices = @transform_7, window_bounds = array<i64: 1, 128>}, {transform_indices = @transform_8, window_bounds = array<i64: 1>}, {pipeline_mode = #tpu.pipeline_mode<synchronous>, transform_indices = @transform_9, window_bounds = array<i64: 1, 128>}, {pipeline_mode = #tpu.pipeline_mode<synchronous>, transform_indices = @transform_10, window_bounds = array<i64: 1, 128>}, {pipeline_mode = #tpu.pipeline_mode<synchronous>, transform_indices = @transform_11, window_bounds = array<i64: 128, 128>}, {pipeline_mode = #tpu.pipeline_mode<synchronous>, transform_indices = @transform_12, window_bounds = array<i64: 1, 128>}, {transform_indices = @transform_13, window_bounds = array<i64: 1, 64, 128>}]} {
    %c0 = arith.constant 0 : index
    %0 = memref.load %arg5[%c0] : memref<1xf32, #tpu.memory_space<smem>>
    %c0_0 = arith.constant 0 : index
    %1 = memref.load %arg10[%c0_0] : memref<1xf32, #tpu.memory_space<smem>>
    %c1_i32 = arith.constant 1 : i32
    %2 = arith.andi %arg1, %c1_i32 : i32
    %c1_i32_1 = arith.constant 1 : i32
    %3 = arith.addi %arg1, %c1_i32_1 : i32
    %c1_i32_2 = arith.constant 1 : i32
    %4 = arith.andi %3, %c1_i32_2 : i32
    %c0_i32 = arith.constant 0 : i32
    %5 = arith.cmpi eq, %arg1, %c0_i32 : i32
    %6 = arith.extui %5 : i1 to i32
    %c0_i32_3 = arith.constant 0 : i32
    %7 = arith.cmpi ne, %6, %c0_i32_3 : i32
    scf.if %7 {
      %c0_i32_64 = arith.constant 0 : i32
      %142 = tpu.assume_multiple %c0_i32_64, 64 : i32
      %c0_i32_65 = arith.constant 0 : i32
      %c0_i32_66 = arith.constant 0 : i32
      %c0_i32_67 = arith.constant 0 : i32
      %143 = tpu.memref_slice %arg2[%arg0, %142, %c0_i32_67] : memref<2x208x128xbf16, #tpu.memory_space<any>> -> memref<1x80x128xbf16, #tpu.memory_space<any>>
      %144 = tpu.memref_squeeze %143 : memref<1x80x128xbf16, #tpu.memory_space<any>> -> memref<80x128xbf16, #tpu.memory_space<any>>
      %c0_i32_68 = arith.constant 0 : i32
      %c0_i32_69 = arith.constant 0 : i32
      %145 = tpu.memref_slice %arg16[%c0_i32_65, %c0_i32_68, %c0_i32_69] : memref<2x80x128xbf16, #tpu.memory_space<vmem>> -> memref<1x80x128xbf16, #tpu.memory_space<vmem>>
      %146 = tpu.memref_squeeze %145 : memref<1x80x128xbf16, #tpu.memory_space<vmem>> -> memref<80x128xbf16, #tpu.memory_space<vmem>>
      %147 = tpu.memref_slice %arg18[%c0_i32_66] : memref<2x!tpu.dma_semaphore, #tpu.memory_space<semaphore_mem>> -> memref<1x!tpu.dma_semaphore, #tpu.memory_space<semaphore_mem>>
      %148 = tpu.memref_squeeze %147 : memref<1x!tpu.dma_semaphore, #tpu.memory_space<semaphore_mem>> -> memref<!tpu.dma_semaphore, #tpu.memory_space<semaphore_mem>>
      tpu.enqueue_dma source(%144 : memref<80x128xbf16, #tpu.memory_space<any>>) target(%146 : memref<80x128xbf16, #tpu.memory_space<vmem>>) target_semaphore(%148 : memref<!tpu.dma_semaphore, #tpu.memory_space<semaphore_mem>>)
    } else {
    }
    %c1_i32_4 = arith.constant 1 : i32
    %8 = arith.addi %arg1, %c1_i32_4 : i32
    %c3_i32 = arith.constant 3 : i32
    %9 = arith.cmpi slt, %8, %c3_i32 : i32
    %10 = arith.extui %9 : i1 to i32
    %c0_i32_5 = arith.constant 0 : i32
    %11 = arith.cmpi ne, %10, %c0_i32_5 : i32
    scf.if %11 {
      %c1_i32_64 = arith.constant 1 : i32
      %142 = arith.addi %arg1, %c1_i32_64 : i32
      %c64_i32_65 = arith.constant 64 : i32
      %143 = arith.muli %142, %c64_i32_65 : i32
      %144 = tpu.assume_multiple %143, 64 : i32
      %c0_i32_66 = arith.constant 0 : i32
      %145 = tpu.memref_slice %arg2[%arg0, %144, %c0_i32_66] : memref<2x208x128xbf16, #tpu.memory_space<any>> -> memref<1x80x128xbf16, #tpu.memory_space<any>>
      %146 = tpu.memref_squeeze %145 : memref<1x80x128xbf16, #tpu.memory_space<any>> -> memref<80x128xbf16, #tpu.memory_space<any>>
      %c0_i32_67 = arith.constant 0 : i32
      %c0_i32_68 = arith.constant 0 : i32
      %147 = tpu.memref_slice %arg16[%4, %c0_i32_67, %c0_i32_68] : memref<2x80x128xbf16, #tpu.memory_space<vmem>> -> memref<1x80x128xbf16, #tpu.memory_space<vmem>>
      %148 = tpu.memref_squeeze %147 : memref<1x80x128xbf16, #tpu.memory_space<vmem>> -> memref<80x128xbf16, #tpu.memory_space<vmem>>
      %149 = tpu.memref_slice %arg18[%4] : memref<2x!tpu.dma_semaphore, #tpu.memory_space<semaphore_mem>> -> memref<1x!tpu.dma_semaphore, #tpu.memory_space<semaphore_mem>>
      %150 = tpu.memref_squeeze %149 : memref<1x!tpu.dma_semaphore, #tpu.memory_space<semaphore_mem>> -> memref<!tpu.dma_semaphore, #tpu.memory_space<semaphore_mem>>
      tpu.enqueue_dma source(%146 : memref<80x128xbf16, #tpu.memory_space<any>>) target(%148 : memref<80x128xbf16, #tpu.memory_space<vmem>>) target_semaphore(%150 : memref<!tpu.dma_semaphore, #tpu.memory_space<semaphore_mem>>)
    } else {
    }
    %c64_i32 = arith.constant 64 : i32
    %12 = arith.muli %arg1, %c64_i32 : i32
    %13 = tpu.assume_multiple %12, 64 : i32
    %c0_i32_6 = arith.constant 0 : i32
    %14 = tpu.memref_slice %arg2[%arg0, %13, %c0_i32_6] : memref<2x208x128xbf16, #tpu.memory_space<any>> -> memref<1x80x128xbf16, #tpu.memory_space<any>>
    %15 = tpu.memref_squeeze %14 : memref<1x80x128xbf16, #tpu.memory_space<any>> -> memref<80x128xbf16, #tpu.memory_space<any>>
    %c0_i32_7 = arith.constant 0 : i32
    %c0_i32_8 = arith.constant 0 : i32
    %16 = tpu.memref_slice %arg16[%2, %c0_i32_7, %c0_i32_8] : memref<2x80x128xbf16, #tpu.memory_space<vmem>> -> memref<1x80x128xbf16, #tpu.memory_space<vmem>>
    %17 = tpu.memref_squeeze %16 : memref<1x80x128xbf16, #tpu.memory_space<vmem>> -> memref<80x128xbf16, #tpu.memory_space<vmem>>
    %18 = tpu.memref_slice %arg18[%2] : memref<2x!tpu.dma_semaphore, #tpu.memory_space<semaphore_mem>> -> memref<1x!tpu.dma_semaphore, #tpu.memory_space<semaphore_mem>>
    %19 = tpu.memref_squeeze %18 : memref<1x!tpu.dma_semaphore, #tpu.memory_space<semaphore_mem>> -> memref<!tpu.dma_semaphore, #tpu.memory_space<semaphore_mem>>
    tpu.wait_dma2 semaphore(%19 : memref<!tpu.dma_semaphore, #tpu.memory_space<semaphore_mem>>) src(%15 : memref<80x128xbf16, #tpu.memory_space<any>>) dst(%17 : memref<80x128xbf16, #tpu.memory_space<vmem>>)
    %20 = arith.index_cast %2 : i32 to index
    %c0_9 = arith.constant 0 : index
    %c0_10 = arith.constant 0 : index
    %21 = vector.load %arg16[%20, %c0_9, %c0_10] : memref<2x80x128xbf16, #tpu.memory_space<vmem>>, vector<1x80x128xbf16>
    %22 = vector.shape_cast %21 : vector<1x80x128xbf16> to vector<80x128xbf16>
    %c0_11 = arith.constant 0 : index
    %c0_12 = arith.constant 0 : index
    %23 = vector.load %arg3[%c0_11, %c0_12] : memref<128x128xbf16, #tpu.memory_space<vmem>>, vector<128x128xbf16>
    %cst = arith.constant dense<0.000000e+00> : vector<80x128xf32>
    %24 = tpu.matmul %22, %23, %cst {dimension_numbers = #tpu.dot_dimension_numbers<[1], [0], [0], [1], [0, 0, 1, 1], [], []>} : vector<80x128xbf16>, vector<128x128xbf16>, vector<80x128xf32> -> vector<80x128xf32>
    %c0_13 = arith.constant 0 : index
    %c0_14 = arith.constant 0 : index
    %25 = vector.load %arg4[%c0_13, %c0_14] : memref<1x128xf32, #tpu.memory_space<vmem>>, vector<1x128xf32>
    %26 = vector.broadcast %25 : vector<1x128xf32> to vector<80x128xf32>
    %27 = arith.addf %24, %26 : vector<80x128xf32>
    %cst_15 = arith.constant 0.000000e+00 : f32
    %28 = vector.broadcast %cst_15 : f32 to vector<80x128xf32>
    %29 = arith.cmpf oge, %27, %28 : vector<80x128xf32>
    %30 = vector.broadcast %0 : f32 to vector<80x128xf32>
    %31 = arith.mulf %30, %27 : vector<80x128xf32>
    %32 = arith.select %29, %27, %31 : vector<80x128xi1>, vector<80x128xf32>
    %c0_16 = arith.constant 0 : index
    %c0_17 = arith.constant 0 : index
    %33 = vector.load %arg6[%c0_16, %c0_17] : memref<1x128xf32, #tpu.memory_space<vmem>>, vector<1x128xf32>
    %c0_18 = arith.constant 0 : index
    %c0_19 = arith.constant 0 : index
    %34 = vector.load %arg7[%c0_18, %c0_19] : memref<1x128xf32, #tpu.memory_space<vmem>>, vector<1x128xf32>
    %cst_20 = arith.constant dense<0.000000e+00> : vector<80xf32>
    %35 = vector.multi_reduction <add>, %32, %cst_20 [1] : vector<80x128xf32> to vector<80xf32>
    %36 = vector.shape_cast %35 : vector<80xf32> to vector<80x1xf32>
    %cst_21 = arith.constant 3.125000e-02 : f32
    %37 = vector.broadcast %cst_21 : f32 to vector<80x1xf32>
    %38 = arith.mulf %36, %37 : vector<80x1xf32>
    %39 = vector.broadcast %38 : vector<80x1xf32> to vector<80x128xf32>
    %40 = arith.subf %32, %39 : vector<80x128xf32>
    %41 = arith.mulf %40, %40 : vector<80x128xf32>
    %42 = tpu.iota {dimensions = array<i32: 1>} : vector<1x128xi32>
    %c32_i32 = arith.constant 32 : i32
    %43 = vector.broadcast %c32_i32 : i32 to vector<1x128xi32>
    %44 = arith.cmpi slt, %42, %43 : vector<1x128xi32>
    %cst_22 = arith.constant 0.000000e+00 : f32
    %45 = vector.shape_cast %44 : vector<1x128xi1> to vector<1x128xi1>
    %46 = vector.broadcast %45 : vector<1x128xi1> to vector<80x128xi1>
    %47 = vector.broadcast %cst_22 : f32 to vector<80x128xf32>
    %48 = arith.select %46, %41, %47 : vector<80x128xi1>, vector<80x128xf32>
    %cst_23 = arith.constant dense<0.000000e+00> : vector<80xf32>
    %49 = vector.multi_reduction <add>, %48, %cst_23 [1] : vector<80x128xf32> to vector<80xf32>
    %50 = vector.shape_cast %49 : vector<80xf32> to vector<80x1xf32>
    %cst_24 = arith.constant 3.125000e-02 : f32
    %51 = vector.broadcast %cst_24 : f32 to vector<80x1xf32>
    %52 = arith.mulf %50, %51 : vector<80x1xf32>
    %cst_25 = arith.constant 9.99999974E-6 : f32
    %53 = vector.broadcast %cst_25 : f32 to vector<80x1xf32>
    %54 = arith.addf %52, %53 : vector<80x1xf32>
    %55 = math.rsqrt %54 : vector<80x1xf32>
    %56 = vector.broadcast %55 : vector<80x1xf32> to vector<80x128xf32>
    %57 = vector.broadcast %33 : vector<1x128xf32> to vector<80x128xf32>
    %58 = arith.mulf %56, %57 : vector<80x128xf32>
    %59 = arith.mulf %40, %58 : vector<80x128xf32>
    %60 = vector.broadcast %34 : vector<1x128xf32> to vector<80x128xf32>
    %61 = arith.addf %59, %60 : vector<80x128xf32>
    %62 = arith.truncf %61 : vector<80x128xf32> to vector<80x128xbf16>
    %c0_26 = arith.constant 0 : index
    %c0_27 = arith.constant 0 : index
    %63 = vector.load %arg17[%c0_26, %c0_27] : memref<80x128xbf16, #tpu.memory_space<vmem>>, vector<80x128xbf16>
    tpu.vector_store %arg17[%c0_26, %c0_27], %62 {strides = array<i32>} : memref<80x128xbf16, #tpu.memory_space<vmem>>, vector<80x128xbf16>,
    %c64_i32_28 = arith.constant 64 : i32
    %64 = arith.muli %arg1, %c64_i32_28 : i32
    %c8_i32 = arith.constant 8 : i32
    %65 = arith.cmpi slt, %64, %c8_i32 : i32
    %c64_i32_29 = arith.constant 64 : i32
    %66 = arith.addi %64, %c64_i32_29 : i32
    %c8_i32_30 = arith.constant 8 : i32
    %67 = arith.addi %66, %c8_i32_30 : i32
    %c192_i32 = arith.constant 192 : i32
    %68 = arith.cmpi sgt, %67, %c192_i32 : i32
    %69 = arith.ori %65, %68 : i1
    %70 = arith.extui %69 : i1 to i32
    %c0_i32_31 = arith.constant 0 : i32
    %71 = arith.cmpi ne, %70, %c0_i32_31 : i32
    scf.if %71 {
      %142 = tpu.iota {dimensions = array<i32: 0>} : vector<80x1xi32>
      %c8_i32_64 = arith.constant 8 : i32
      %143 = arith.subi %64, %c8_i32_64 : i32
      %144 = vector.broadcast %143 : i32 to vector<80x1xi32>
      %145 = arith.addi %142, %144 : vector<80x1xi32>
      %c0_i32_65 = arith.constant 0 : i32
      %146 = vector.broadcast %c0_i32_65 : i32 to vector<80x1xi32>
      %147 = arith.cmpi sge, %145, %146 : vector<80x1xi32>
      %c192_i32_66 = arith.constant 192 : i32
      %148 = vector.broadcast %c192_i32_66 : i32 to vector<80x1xi32>
      %149 = arith.cmpi slt, %145, %148 : vector<80x1xi32>
      %150 = arith.andi %147, %149 : vector<80x1xi1>
      %c0_67 = arith.constant 0 : index
      %c0_68 = arith.constant 0 : index
      %151 = vector.load %arg17[%c0_67, %c0_68] : memref<80x128xbf16, #tpu.memory_space<vmem>>, vector<80x128xbf16>
      %cst_69 = arith.constant 0.000000e+00 : f32
      %152 = arith.truncf %cst_69 : f32 to bf16
      %153 = vector.shape_cast %150 : vector<80x1xi1> to vector<80x1xi1>
      %154 = vector.broadcast %153 : vector<80x1xi1> to vector<80x128xi1>
      %155 = vector.broadcast %152 : bf16 to vector<80x128xbf16>
      %156 = arith.select %154, %151, %155 : vector<80x128xi1>, vector<80x128xbf16>
      %c0_70 = arith.constant 0 : index
      %c0_71 = arith.constant 0 : index
      %157 = vector.load %arg17[%c0_70, %c0_71] : memref<80x128xbf16, #tpu.memory_space<vmem>>, vector<80x128xbf16>
      tpu.vector_store %arg17[%c0_70, %c0_71], %156 {strides = array<i32>} : memref<80x128xbf16, #tpu.memory_space<vmem>>, vector<80x128xbf16>,
    } else {
    }
    %cst_32 = arith.constant 0.000000e+00 : f32
    %72 = vector.broadcast %cst_32 : f32 to vector<64x128xf32>
    %c6 = arith.constant 6 : index
    %c0_33 = arith.constant 0 : index
    %73 = vector.load %arg17[%c6, %c0_33] : memref<80x128xbf16, #tpu.memory_space<vmem>>, vector<64x128xbf16>
    %74 = arith.extf %73 : vector<64x128xbf16> to vector<64x128xf32>
    %c0_34 = arith.constant 0 : index
    %c0_35 = arith.constant 0 : index
    %75 = vector.load %arg8[%c0_34, %c0_35] : memref<3x128xf32, #tpu.memory_space<vmem>>, vector<1x128xf32>
    %76 = vector.broadcast %75 : vector<1x128xf32> to vector<64x128xf32>
    %77 = arith.mulf %76, %74 : vector<64x128xf32>
    %78 = arith.addf %72, %77 : vector<64x128xf32>
    %c8 = arith.constant 8 : index
    %c0_36 = arith.constant 0 : index
    %79 = vector.load %arg17[%c8, %c0_36] : memref<80x128xbf16, #tpu.memory_space<vmem>>, vector<64x128xbf16>
    %80 = arith.extf %79 : vector<64x128xbf16> to vector<64x128xf32>
    %c1 = arith.constant 1 : index
    %c0_37 = arith.constant 0 : index
    %81 = vector.load %arg8[%c1, %c0_37] : memref<3x128xf32, #tpu.memory_space<vmem>>, vector<1x128xf32>
    %82 = vector.broadcast %81 : vector<1x128xf32> to vector<64x128xf32>
    %83 = arith.mulf %82, %80 : vector<64x128xf32>
    %84 = arith.addf %78, %83 : vector<64x128xf32>
    %c10 = arith.constant 10 : index
    %c0_38 = arith.constant 0 : index
    %85 = vector.load %arg17[%c10, %c0_38] : memref<80x128xbf16, #tpu.memory_space<vmem>>, vector<64x128xbf16>
    %86 = arith.extf %85 : vector<64x128xbf16> to vector<64x128xf32>
    %c2 = arith.constant 2 : index
    %c0_39 = arith.constant 0 : index
    %87 = vector.load %arg8[%c2, %c0_39] : memref<3x128xf32, #tpu.memory_space<vmem>>, vector<1x128xf32>
    %88 = vector.broadcast %87 : vector<1x128xf32> to vector<64x128xf32>
    %89 = arith.mulf %88, %86 : vector<64x128xf32>
    %90 = arith.addf %84, %89 : vector<64x128xf32>
    %c0_40 = arith.constant 0 : index
    %c0_41 = arith.constant 0 : index
    %91 = vector.load %arg9[%c0_40, %c0_41] : memref<1x128xf32, #tpu.memory_space<vmem>>, vector<1x128xf32>
    %92 = vector.broadcast %91 : vector<1x128xf32> to vector<64x128xf32>
    %93 = arith.addf %90, %92 : vector<64x128xf32>
    %cst_42 = arith.constant 0.000000e+00 : f32
    %94 = vector.broadcast %cst_42 : f32 to vector<64x128xf32>
    %95 = arith.cmpf oge, %93, %94 : vector<64x128xf32>
    %96 = vector.broadcast %1 : f32 to vector<64x128xf32>
    %97 = arith.mulf %96, %93 : vector<64x128xf32>
    %98 = arith.select %95, %93, %97 : vector<64x128xi1>, vector<64x128xf32>
    %c0_43 = arith.constant 0 : index
    %c0_44 = arith.constant 0 : index
    %99 = vector.load %arg11[%c0_43, %c0_44] : memref<1x128xf32, #tpu.memory_space<vmem>>, vector<1x128xf32>
    %c0_45 = arith.constant 0 : index
    %c0_46 = arith.constant 0 : index
    %100 = vector.load %arg12[%c0_45, %c0_46] : memref<1x128xf32, #tpu.memory_space<vmem>>, vector<1x128xf32>
    %cst_47 = arith.constant dense<0.000000e+00> : vector<64xf32>
    %101 = vector.multi_reduction <add>, %98, %cst_47 [1] : vector<64x128xf32> to vector<64xf32>
    %102 = vector.shape_cast %101 : vector<64xf32> to vector<64x1xf32>
    %cst_48 = arith.constant 3.125000e-02 : f32
    %103 = vector.broadcast %cst_48 : f32 to vector<64x1xf32>
    %104 = arith.mulf %102, %103 : vector<64x1xf32>
    %105 = vector.broadcast %104 : vector<64x1xf32> to vector<64x128xf32>
    %106 = arith.subf %98, %105 : vector<64x128xf32>
    %107 = arith.mulf %106, %106 : vector<64x128xf32>
    %108 = tpu.iota {dimensions = array<i32: 1>} : vector<1x128xi32>
    %c32_i32_49 = arith.constant 32 : i32
    %109 = vector.broadcast %c32_i32_49 : i32 to vector<1x128xi32>
    %110 = arith.cmpi slt, %108, %109 : vector<1x128xi32>
    %cst_50 = arith.constant 0.000000e+00 : f32
    %111 = vector.shape_cast %110 : vector<1x128xi1> to vector<1x128xi1>
    %112 = vector.broadcast %111 : vector<1x128xi1> to vector<64x128xi1>
    %113 = vector.broadcast %cst_50 : f32 to vector<64x128xf32>
    %114 = arith.select %112, %107, %113 : vector<64x128xi1>, vector<64x128xf32>
    %cst_51 = arith.constant dense<0.000000e+00> : vector<64xf32>
    %115 = vector.multi_reduction <add>, %114, %cst_51 [1] : vector<64x128xf32> to vector<64xf32>
    %116 = vector.shape_cast %115 : vector<64xf32> to vector<64x1xf32>
    %cst_52 = arith.constant 3.125000e-02 : f32
    %117 = vector.broadcast %cst_52 : f32 to vector<64x1xf32>
    %118 = arith.mulf %116, %117 : vector<64x1xf32>
    %cst_53 = arith.constant 9.99999974E-6 : f32
    %119 = vector.broadcast %cst_53 : f32 to vector<64x1xf32>
    %120 = arith.addf %118, %119 : vector<64x1xf32>
    %121 = math.rsqrt %120 : vector<64x1xf32>
    %122 = vector.broadcast %121 : vector<64x1xf32> to vector<64x128xf32>
    %123 = vector.broadcast %99 : vector<1x128xf32> to vector<64x128xf32>
    %124 = arith.mulf %122, %123 : vector<64x128xf32>
    %125 = arith.mulf %106, %124 : vector<64x128xf32>
    %126 = vector.broadcast %100 : vector<1x128xf32> to vector<64x128xf32>
    %127 = arith.addf %125, %126 : vector<64x128xf32>
    %128 = arith.truncf %127 : vector<64x128xf32> to vector<64x128xbf16>
    %c0_54 = arith.constant 0 : index
    %c0_55 = arith.constant 0 : index
    %129 = vector.load %arg13[%c0_54, %c0_55] : memref<128x128xbf16, #tpu.memory_space<vmem>>, vector<128x128xbf16>
    %cst_56 = arith.constant dense<0.000000e+00> : vector<64x128xf32>
    %130 = tpu.matmul %128, %129, %cst_56 {dimension_numbers = #tpu.dot_dimension_numbers<[1], [0], [0], [1], [0, 0, 1, 1], [], []>} : vector<64x128xbf16>, vector<128x128xbf16>, vector<64x128xf32> -> vector<64x128xf32>
    %131 = arith.index_cast %2 : i32 to index
    %c8_57 = arith.constant 8 : index
    %c0_58 = arith.constant 0 : index
    %132 = vector.load %arg16[%131, %c8_57, %c0_58] : memref<2x80x128xbf16, #tpu.memory_space<vmem>>, vector<1x64x128xbf16>
    %133 = vector.shape_cast %132 : vector<1x64x128xbf16> to vector<64x128xbf16>
    %134 = arith.extf %133 : vector<64x128xbf16> to vector<64x128xf32>
    %c0_59 = arith.constant 0 : index
    %c0_60 = arith.constant 0 : index
    %135 = vector.load %arg14[%c0_59, %c0_60] : memref<1x128xf32, #tpu.memory_space<vmem>>, vector<1x128xf32>
    %136 = vector.broadcast %135 : vector<1x128xf32> to vector<64x128xf32>
    %137 = arith.addf %130, %136 : vector<64x128xf32>
    %138 = arith.addf %137, %134 : vector<64x128xf32>
    %c0_61 = arith.constant 0 : index
    %c0_62 = arith.constant 0 : index
    %c0_63 = arith.constant 0 : index
    %139 = vector.load %arg15[%c0_61, %c0_62, %c0_63] : memref<1x64x128xf32, #tpu.memory_space<vmem>>, vector<1x64x128xf32>
    %140 = vector.shape_cast %139 : vector<1x64x128xf32> to vector<64x128xf32>
    %141 = vector.shape_cast %138 : vector<64x128xf32> to vector<1x64x128xf32>
    tpu.vector_store %arg15[%c0_61, %c0_62, %c0_63], %141 {strides = array<i32>} : memref<1x64x128xf32, #tpu.memory_space<vmem>>, vector<1x64x128xf32>,
    return
  }
  func.func @transform_1(%arg0: i32, %arg1: i32) -> (i32, i32) {
    %c0_i32 = arith.constant 0 : i32
    %c0_i32_0 = arith.constant 0 : i32
    %c0_i32_1 = arith.constant 0 : i32
    return %c0_i32, %c0_i32_0 : i32, i32
  }
  func.func @transform_2(%arg0: i32, %arg1: i32) -> (i32, i32) {
    %c0_i32 = arith.constant 0 : i32
    %c0_i32_0 = arith.constant 0 : i32
    %c0_i32_1 = arith.constant 0 : i32
    return %c0_i32, %c0_i32_0 : i32, i32
  }
  func.func @transform_3(%arg0: i32, %arg1: i32) -> i32 {
    %c0_i32 = arith.constant 0 : i32
    %c0_i32_0 = arith.constant 0 : i32
    return %c0_i32 : i32
  }
  func.func @transform_4(%arg0: i32, %arg1: i32) -> (i32, i32) {
    %c0_i32 = arith.constant 0 : i32
    %c0_i32_0 = arith.constant 0 : i32
    %c0_i32_1 = arith.constant 0 : i32
    return %c0_i32, %c0_i32_0 : i32, i32
  }
  func.func @transform_5(%arg0: i32, %arg1: i32) -> (i32, i32) {
    %c0_i32 = arith.constant 0 : i32
    %c0_i32_0 = arith.constant 0 : i32
    %c0_i32_1 = arith.constant 0 : i32
    return %c0_i32, %c0_i32_0 : i32, i32
  }
  func.func @transform_6(%arg0: i32, %arg1: i32) -> (i32, i32) {
    %c0_i32 = arith.constant 0 : i32
    %c0_i32_0 = arith.constant 0 : i32
    %c0_i32_1 = arith.constant 0 : i32
    return %c0_i32, %c0_i32_0 : i32, i32
  }
  func.func @transform_7(%arg0: i32, %arg1: i32) -> (i32, i32) {
    %c0_i32 = arith.constant 0 : i32
    %c0_i32_0 = arith.constant 0 : i32
    %c0_i32_1 = arith.constant 0 : i32
    return %c0_i32, %c0_i32_0 : i32, i32
  }
  func.func @transform_8(%arg0: i32, %arg1: i32) -> i32 {
    %c0_i32 = arith.constant 0 : i32
    %c0_i32_0 = arith.constant 0 : i32
    return %c0_i32 : i32
  }
  func.func @transform_9(%arg0: i32, %arg1: i32) -> (i32, i32) {
    %c0_i32 = arith.constant 0 : i32
    %c0_i32_0 = arith.constant 0 : i32
    %c0_i32_1 = arith.constant 0 : i32
    return %c0_i32, %c0_i32_0 : i32, i32
  }
  func.func @transform_10(%arg0: i32, %arg1: i32) -> (i32, i32) {
    %c0_i32 = arith.constant 0 : i32
    %c0_i32_0 = arith.constant 0 : i32
    %c0_i32_1 = arith.constant 0 : i32
    return %c0_i32, %c0_i32_0 : i32, i32
  }
  func.func @transform_11(%arg0: i32, %arg1: i32) -> (i32, i32) {
    %c0_i32 = arith.constant 0 : i32
    %c0_i32_0 = arith.constant 0 : i32
    %c0_i32_1 = arith.constant 0 : i32
    return %c0_i32, %c0_i32_0 : i32, i32
  }
  func.func @transform_12(%arg0: i32, %arg1: i32) -> (i32, i32) {
    %c0_i32 = arith.constant 0 : i32
    %c0_i32_0 = arith.constant 0 : i32
    %c0_i32_1 = arith.constant 0 : i32
    return %c0_i32, %c0_i32_0 : i32, i32
  }
  func.func @transform_13(%arg0: i32, %arg1: i32) -> (i32, i32, i32) {
    %c0_i32 = arith.constant 0 : i32
    %c0_i32_0 = arith.constant 0 : i32
    return %arg0, %arg1, %c0_i32 : i32, i32, i32
  }
}

</mosaic_0001>

<llo_original>
// kernel: tpu_custom_call.1
$region0: #{tpu_custom_call.1}
  #allocation0 [shape = 'u32[]', space=smem, size = 0x4, offset = 0x4, fixed_abs, tag = 'smem constant byte address 0x4 - core index']
  #allocation1 [shape = 'u32[144,128]{1,0:T(1,128)}', space=vmem, size = 0x12000, scoped, tag = 'internal scratch']
  #allocation2 [shape = 'bf16[2,80,128]{2,1,0:T(8,128)(2,1)}', space=vmem, size = 0xa000, scoped, tag = 'scratch operand']
  #allocation3 [shape = 'bf16[80,128]{1,0:T(8,128)(2,1)}', space=vmem, size = 0x5000, scoped, tag = 'scratch operand']
  #allocation4 [shape = 's32[2]{0}', space=sflag, size = 0x8, scoped, tag = 'scratch operand']
  #allocation5 [shape = 'f32[1]{0:T(128)S(6)}', space=smem, size = 0x200, scoped, tag = 'scoped memory for tpu_custom_call.1']
  #allocation6 [shape = 'f32[1]{0:T(128)S(6)}', space=smem, size = 0x200, scoped, tag = 'scoped memory for tpu_custom_call.1']
  #allocation13 [shape = 's32[]', space=sflag, size = 0x4, offset = 0, fixed_abs, tag = 'sflag constant byte address 0x0 - dummy sync flag']
  #allocation14 [shape = 's32[]', space=sflag, size = 0x4, offset = 0, fixed_abs, tag = 'sflag constant byte address 0x0 - dummy sync flag']
  #allocation15 [shape = 'u32[]', space=smem, size = 0x4, offset = 0x44, fixed_abs, tag = 'smem constant byte address 0x44 - assertion arg 0']
  #allocation16 [shape = 'u32[]', space=smem, size = 0x4, offset = 0x48, fixed_abs, tag = 'smem constant byte address 0x48 - assertion arg 1']
  #allocation17 [shape = 's32[]', space=sflag, size = 0x4, offset = 0, fixed_abs, tag = 'sflag constant byte address 0x0 - dummy sync flag']
  #allocation18 [shape = 's32[]', space=sflag, size = 0x4, offset = 0, fixed_abs, tag = 'sflag constant byte address 0x0 - dummy sync flag']
  %s0 = inlined_call_operand.hbm [shape: bf16[2,208,128], index: 0, kind: input, shape index: {}]
  %s1 = inlined_call_operand.hbm [shape: bf16[128,128], index: 1, kind: input, shape index: {}]
  %s2 = inlined_call_operand.vmem [shape: f32[1,128], index: 2, kind: input, shape index: {}]
  %s3 = inlined_call_operand.<no memory space> [shape: f32[1], index: 3, kind: input, shape index: {}]
  %s4 = inlined_call_operand.vmem [shape: f32[1,128], index: 4, kind: input, shape index: {}]
  %s5 = inlined_call_operand.vmem [shape: f32[1,128], index: 5, kind: input, shape index: {}]
  %s6 = inlined_call_operand.vmem [shape: f32[3,128], index: 6, kind: input, shape index: {}]
  %s7 = inlined_call_operand.vmem [shape: f32[1,128], index: 7, kind: input, shape index: {}]
  %s8 = inlined_call_operand.<no memory space> [shape: f32[1], index: 8, kind: input, shape index: {}]
  %s9 = inlined_call_operand.vmem [shape: f32[1,128], index: 9, kind: input, shape index: {}]
  %s10 = inlined_call_operand.vmem [shape: f32[1,128], index: 10, kind: input, shape index: {}]
  %s11 = inlined_call_operand.hbm [shape: bf16[128,128], index: 11, kind: input, shape index: {}]
  %s12 = inlined_call_operand.vmem [shape: f32[1,128], index: 12, kind: input, shape index: {}]
  %s13 = inlined_call_operand.hbm [shape: f32[2,192,128], index: 13, kind: output, shape index: {}]
  %s14 = sld [smem:[#allocation0]]
  $region109: #{tpu_custom_call.1} parent=0
    _
  %s16 = ssub.s32 1, %s14
  %s17 = scalar_select 0, %s16, %s14
  %18 = sst [smem:[#allocation5]] %s3
  %19 = sst [smem:[#allocation6]] %s8
  $region1: #{tpu_custom_call.1} parent=0
    #allocation7 [shape = 'u8[32768]{0}', space=vmem, size = 0x8000, scoped, tag = 'input window, operand 1, single buffered']
    #allocation8 [shape = 's32[2]{0}', space=sflag, size = 0x8, scoped, tag = 'scoped memory for tpu_custom_call.1']
    #allocation9 [shape = 's32[2]{0}', space=sflag, size = 0x8, scoped, tag = 'scoped memory for tpu_custom_call.1']
    #allocation10 [shape = 'u8[32768]{0}', space=vmem, size = 0x8000, scoped, tag = 'input window, operand 11, single buffered']
    #allocation11 [shape = 's32[1]{0}', space=sflag, size = 0x4, scoped, tag = 'scoped memory for tpu_custom_call.1']
    #allocation12 [shape = 'u8[65536]{0}', space=vmem, size = 0x10000, scoped, tag = 'output window, operand 0']
    %20 = vsyncpa [#allocation8], 0
    %21 = vsyncpa [#allocation11], 0
    %22 = vsyncpa [#allocation9], 0
    %s23 = scalar_lea.sflag [#allocation9], 1
    %24 = vsyncpa %s23, 0
    loop: start=0, step=1, limit=8
    $region2: #{tpu_custom_call.1} parent=1 // loop_pre_header
      _
    $region3: #{tpu_custom_call.1} parent=1 // loop_header
      %s26 = sphi 0, %s30
      %p27 = scmp.ge.s32.totalorder %s26, 8
      %s33 = sphi 0, %s45
      %s34 = sphi 0, %s41
      %s35 = sphi 0, %s33
      %s36 = sphi 0, %s34
      %s37 = sphi 0, %s35
      %s38 = sphi 0, %s36
      %s46 = sphi 0, %s46
      %s48 = sphi 0, %s46
      %s49 = sphi 0, %s48
      %s63 = sphi 0, %s49
      %s67 = sphi 0, %s67
      %s69 = sphi 0, %s67
      %s70 = sphi 0, %s69
      %s84 = sphi 0, %s70
      %s88 = sphi 0, %s88
      %s90 = sphi 0, %s88
      %s91 = sphi 0, %s90
      %s105 = sphi 0, %s91
      %s109 = sphi 0, %s109
      %s111 = sphi 0, %s109
      %s112 = sphi 0, %s111
      %s126 = sphi 0, %s112
      %s130 = sphi 0, %s130
      %s132 = sphi 0, %s130
      %s133 = sphi 0, %s132
      %s147 = sphi 0, %s133
      %s151 = sphi 0, %s151
      %s153 = sphi 0, %s151
      %s154 = sphi 0, %s153
      %s168 = sphi 0, %s154
      %s172 = sphi 0, %s172
      %s174 = sphi 0, %s172
      %s175 = sphi 0, %s174
      %s189 = sphi 0, %s175
      %s193 = sphi 0, %s193
      %s195 = sphi 0, %s193
      %s196 = sphi 0, %s195
      %s210 = sphi 0, %s196
      %s214 = sphi 0, %s214
      %s216 = sphi 0, %s214
      %s217 = sphi 0, %s216
      %s231 = sphi 0, %s217
      %s235 = sphi 0, %s235
      %s237 = sphi 0, %s235
      %s238 = sphi 0, %s237
      %s252 = sphi 0, %s238
      %s256 = sphi 0, %s256
      %s258 = sphi 0, %s256
      %s259 = sphi 0, %s258
      %s273 = sphi 0, %s259
      %s277 = sphi 0, %s277
      %s279 = sphi 0, %s277
      %s280 = sphi 0, %s279
      %s294 = sphi 0, %s280
      %s302 = sphi 0, %s304
      %s305 = sphi 0, %s302
      %s306 = sphi 0, %s305
      %s322 = sphi 0, %s306
    $region4: #{tpu_custom_call.1} parent=1 // loop_header_branch
      %29 = sbr.rel (%p27) target = $region8
    $region5: #{tpu_custom_call.1} parent=1 // loop_body
      %s31 = ssub.s32 %s26, 1
      %s32 = ssub.s32 %s26, 2
      %s39 = sadd.s32 1, %s34
      %p40 = scmp.ge.s32.totalorder %s39, 3
      %s41 = scalar_select %p40, 0, %s39
      %s42 = sadd.s32 1, %s33
      %s43 = scalar_select %p40, %s42, %s33
      %p44 = scmp.ge.s32.totalorder %s43, 2
      %s45 = scalar_select %p44, 0, %s43
      %s47 = sadd.s32 %s46, 1
      %p50 = scmp.eq.s32.totalorder %s26, 5
      %p51 = scmp.ne.s32.totalorder %s46, %s48
      %p52 = scmp.eq.s32.totalorder %s26, 0
      %p53 = por %p51, %p52
      %p54 = scmp.ne.s32.totalorder %s46, %s48
      %p55 = scmp.eq.s32.totalorder %s31, 5
      %p56 = por %p54, %p55
      %p57 = scmp.ne.s32.totalorder %s48, %s49
      %p58 = scmp.eq.s32.totalorder %s31, 0
      %p59 = por %p57, %p58
      %p60 = scmp.ne.s32.totalorder %s48, %s49
      %p61 = scmp.eq.s32.totalorder %s32, 5
      %p62 = por %p60, %p61
      %p64 = scmp.ne.s32.totalorder %s49, %s63
      %p65 = scmp.eq.s32.totalorder %s32, 0
      %p66 = por %p64, %p65
      %s68 = sadd.s32 %s67, 1
      %p71 = scmp.eq.s32.totalorder %s26, 5
      %p72 = scmp.ne.s32.totalorder %s67, %s69
      %p73 = scmp.eq.s32.totalorder %s26, 0
      %p74 = por %p72, %p73
      %p75 = scmp.ne.s32.totalorder %s67, %s69
      %p76 = scmp.eq.s32.totalorder %s31, 5
      %p77 = por %p75, %p76
      %p78 = scmp.ne.s32.totalorder %s69, %s70
      %p79 = scmp.eq.s32.totalorder %s31, 0
      %p80 = por %p78, %p79
      %p81 = scmp.ne.s32.totalorder %s69, %s70
      %p82 = scmp.eq.s32.totalorder %s32, 5
      %p83 = por %p81, %p82
      %p85 = scmp.ne.s32.totalorder %s70, %s84
      %p86 = scmp.eq.s32.totalorder %s32, 0
      %p87 = por %p85, %p86
      %s89 = sadd.s32 %s88, 1
      %p92 = scmp.eq.s32.totalorder %s26, 5
      %p93 = scmp.ne.s32.totalorder %s88, %s90
      %p94 = scmp.eq.s32.totalorder %s26, 0
      %p95 = por %p93, %p94
      %p96 = scmp.ne.s32.totalorder %s88, %s90
      %p97 = scmp.eq.s32.totalorder %s31, 5
      %p98 = por %p96, %p97
      %p99 = scmp.ne.s32.totalorder %s90, %s91
      %p100 = scmp.eq.s32.totalorder %s31, 0
      %p101 = por %p99, %p100
      %p102 = scmp.ne.s32.totalorder %s90, %s91
      %p103 = scmp.eq.s32.totalorder %s32, 5
      %p104 = por %p102, %p103
      %p106 = scmp.ne.s32.totalorder %s91, %s105
      %p107 = scmp.eq.s32.totalorder %s32, 0
      %p108 = por %p106, %p107
      %s110 = sadd.s32 %s109, 1
      %p113 = scmp.eq.s32.totalorder %s26, 5
      %p114 = scmp.ne.s32.totalorder %s109, %s111
      %p115 = scmp.eq.s32.totalorder %s26, 0
      %p116 = por %p114, %p115
      %p117 = scmp.ne.s32.totalorder %s109, %s111
      %p118 = scmp.eq.s32.totalorder %s31, 5
      %p119 = por %p117, %p118
      %p120 = scmp.ne.s32.totalorder %s111, %s112
      %p121 = scmp.eq.s32.totalorder %s31, 0
      %p122 = por %p120, %p121
      %p123 = scmp.ne.s32.totalorder %s111, %s112
      %p124 = scmp.eq.s32.totalorder %s32, 5
      %p125 = por %p123, %p124
      %p127 = scmp.ne.s32.totalorder %s112, %s126
      %p128 = scmp.eq.s32.totalorder %s32, 0
      %p129 = por %p127, %p128
      %s131 = sadd.s32 %s130, 1
      %p134 = scmp.eq.s32.totalorder %s26, 5
      %p135 = scmp.ne.s32.totalorder %s130, %s132
      %p136 = scmp.eq.s32.totalorder %s26, 0
      %p137 = por %p135, %p136
      %p138 = scmp.ne.s32.totalorder %s130, %s132
      %p139 = scmp.eq.s32.totalorder %s31, 5
      %p140 = por %p138, %p139
      %p141 = scmp.ne.s32.totalorder %s132, %s133
      %p142 = scmp.eq.s32.totalorder %s31, 0
      %p143 = por %p141, %p142
      %p144 = scmp.ne.s32.totalorder %s132, %s133
      %p145 = scmp.eq.s32.totalorder %s32, 5
      %p146 = por %p144, %p145
      %p148 = scmp.ne.s32.totalorder %s133, %s147
      %p149 = scmp.eq.s32.totalorder %s32, 0
      %p150 = por %p148, %p149
      %s152 = sadd.s32 %s151, 1
      %p155 = scmp.eq.s32.totalorder %s26, 5
      %p156 = scmp.ne.s32.totalorder %s151, %s153
      %p157 = scmp.eq.s32.totalorder %s26, 0
      %p158 = por %p156, %p157
      %p159 = scmp.ne.s32.totalorder %s151, %s153
      %p160 = scmp.eq.s32.totalorder %s31, 5
      %p161 = por %p159, %p160
      %p162 = scmp.ne.s32.totalorder %s153, %s154
      %p163 = scmp.eq.s32.totalorder %s31, 0
      %p164 = por %p162, %p163
      %p165 = scmp.ne.s32.totalorder %s153, %s154
      %p166 = scmp.eq.s32.totalorder %s32, 5
      %p167 = por %p165, %p166
      %p169 = scmp.ne.s32.totalorder %s154, %s168
      %p170 = scmp.eq.s32.totalorder %s32, 0
      %p171 = por %p169, %p170
      %s173 = sadd.s32 %s172, 1
      %p176 = scmp.eq.s32.totalorder %s26, 5
      %p177 = scmp.ne.s32.totalorder %s172, %s174
      %p178 = scmp.eq.s32.totalorder %s26, 0
      %p179 = por %p177, %p178
      %p180 = scmp.ne.s32.totalorder %s172, %s174
      %p181 = scmp.eq.s32.totalorder %s31, 5
      %p182 = por %p180, %p181
      %p183 = scmp.ne.s32.totalorder %s174, %s175
      %p184 = scmp.eq.s32.totalorder %s31, 0
      %p185 = por %p183, %p184
      %p186 = scmp.ne.s32.totalorder %s174, %s175
      %p187 = scmp.eq.s32.totalorder %s32, 5
      %p188 = por %p186, %p187
      %p190 = scmp.ne.s32.totalorder %s175, %s189
      %p191 = scmp.eq.s32.totalorder %s32, 0
      %p192 = por %p190, %p191
      %s194 = sadd.s32 %s193, 1
      %p197 = scmp.eq.s32.totalorder %s26, 5
      %p198 = scmp.ne.s32.totalorder %s193, %s195
      %p199 = scmp.eq.s32.totalorder %s26, 0
      %p200 = por %p198, %p199
      %p201 = scmp.ne.s32.totalorder %s193, %s195
      %p202 = scmp.eq.s32.totalorder %s31, 5
      %p203 = por %p201, %p202
      %p204 = scmp.ne.s32.totalorder %s195, %s196
      %p205 = scmp.eq.s32.totalorder %s31, 0
      %p206 = por %p204, %p205
      %p207 = scmp.ne.s32.totalorder %s195, %s196
      %p208 = scmp.eq.s32.totalorder %s32, 5
      %p209 = por %p207, %p208
      %p211 = scmp.ne.s32.totalorder %s196, %s210
      %p212 = scmp.eq.s32.totalorder %s32, 0
      %p213 = por %p211, %p212
      %s215 = sadd.s32 %s214, 1
      %p218 = scmp.eq.s32.totalorder %s26, 5
      %p219 = scmp.ne.s32.totalorder %s214, %s216
      %p220 = scmp.eq.s32.totalorder %s26, 0
      %p221 = por %p219, %p220
      %p222 = scmp.ne.s32.totalorder %s214, %s216
      %p223 = scmp.eq.s32.totalorder %s31, 5
      %p224 = por %p222, %p223
      %p225 = scmp.ne.s32.totalorder %s216, %s217
      %p226 = scmp.eq.s32.totalorder %s31, 0
      %p227 = por %p225, %p226
      %p228 = scmp.ne.s32.totalorder %s216, %s217
      %p229 = scmp.eq.s32.totalorder %s32, 5
      %p230 = por %p228, %p229
      %p232 = scmp.ne.s32.totalorder %s217, %s231
      %p233 = scmp.eq.s32.totalorder %s32, 0
      %p234 = por %p232, %p233
      %s236 = sadd.s32 %s235, 1
      %p239 = scmp.eq.s32.totalorder %s26, 5
      %p240 = scmp.ne.s32.totalorder %s235, %s237
      %p241 = scmp.eq.s32.totalorder %s26, 0
      %p242 = por %p240, %p241
      %p243 = scmp.ne.s32.totalorder %s235, %s237
      %p244 = scmp.eq.s32.totalorder %s31, 5
      %p245 = por %p243, %p244
      %p246 = scmp.ne.s32.totalorder %s237, %s238
      %p247 = scmp.eq.s32.totalorder %s31, 0
      %p248 = por %p246, %p247
      %p249 = scmp.ne.s32.totalorder %s237, %s238
      %p250 = scmp.eq.s32.totalorder %s32, 5
      %p251 = por %p249, %p250
      %p253 = scmp.ne.s32.totalorder %s238, %s252
      %p254 = scmp.eq.s32.totalorder %s32, 0
      %p255 = por %p253, %p254
      %s257 = sadd.s32 %s256, 1
      %p260 = scmp.eq.s32.totalorder %s26, 5
      %p261 = scmp.ne.s32.totalorder %s256, %s258
      %p262 = scmp.eq.s32.totalorder %s26, 0
      %p263 = por %p261, %p262
      %p264 = scmp.ne.s32.totalorder %s256, %s258
      %p265 = scmp.eq.s32.totalorder %s31, 5
      %p266 = por %p264, %p265
      %p267 = scmp.ne.s32.totalorder %s258, %s259
      %p268 = scmp.eq.s32.totalorder %s31, 0
      %p269 = por %p267, %p268
      %p270 = scmp.ne.s32.totalorder %s258, %s259
      %p271 = scmp.eq.s32.totalorder %s32, 5
      %p272 = por %p270, %p271
      %p274 = scmp.ne.s32.totalorder %s259, %s273
      %p275 = scmp.eq.s32.totalorder %s32, 0
      %p276 = por %p274, %p275
      %s278 = sadd.s32 %s277, 1
      %p281 = scmp.eq.s32.totalorder %s26, 5
      %p282 = scmp.ne.s32.totalorder %s277, %s279
      %p283 = scmp.eq.s32.totalorder %s26, 0
      %p284 = por %p282, %p283
      %p285 = scmp.ne.s32.totalorder %s277, %s279
      %p286 = scmp.eq.s32.totalorder %s31, 5
      %p287 = por %p285, %p286
      %p288 = scmp.ne.s32.totalorder %s279, %s280
      %p289 = scmp.eq.s32.totalorder %s31, 0
      %p290 = por %p288, %p289
      %p291 = scmp.ne.s32.totalorder %s279, %s280
      %p292 = scmp.eq.s32.totalorder %s32, 5
      %p293 = por %p291, %p292
      %p295 = scmp.ne.s32.totalorder %s280, %s294
      %p296 = scmp.eq.s32.totalorder %s32, 0
      %p297 = por %p295, %p296
      %s298 = ssub.s32 %s33, %s45
      %s299 = ssub.s32 %s34, %s41
      %s300 = sor.u32 %s298, %s299
      %p301 = scmp.eq.s32.totalorder %s300, 0
      %s303 = sadd.s32 %s302, 1
      %s304 = scalar_select %p301, %s302, %s303
      %p307 = pneg %p301
      %p308 = scmp.eq.s32.totalorder %s26, 5
      %p309 = por %p307, %p308
      %p310 = scmp.ne.s32.totalorder %s302, %s305
      %p311 = scmp.eq.s32.totalorder %s26, 0
      %p312 = por %p310, %p311
      %p313 = scmp.ne.s32.totalorder %s302, %s305
      %p314 = scmp.eq.s32.totalorder %s31, 5
      %p315 = por %p313, %p314
      %p316 = scmp.ne.s32.totalorder %s305, %s306
      %p317 = scmp.eq.s32.totalorder %s31, 0
      %p318 = por %p316, %p317
      %p319 = scmp.ne.s32.totalorder %s305, %s306
      %p320 = scmp.eq.s32.totalorder %s32, 5
      %p321 = por %p319, %p320
      %p323 = scmp.ne.s32.totalorder %s306, %s322
      %p324 = scmp.eq.s32.totalorder %s32, 0
      %p325 = por %p323, %p324
      %p326 = scmp.le.s32.totalorder 1, %s26
      %p327 = scmp.lt.s32.totalorder %s26, 7
      %p328 = pnand %p326, %p327
      %p329 = pneg %p328
      // Predicated region
      $region9: #{tpu_custom_call.1} parent=5 // pred_check
        _
      $region10: #{tpu_custom_call.1} parent=5 // pred_check_branch
        %331 = sbr.rel (%p328) target = $region12
      $region11: #{tpu_custom_call.1} parent=5 // pred_region
        %s332 = ssub.s32 %s26, 1
        // Predicated region
        $region13: #{tpu_custom_call.1} parent=11 // pred_check
          %p333 = pneg %p59
        $region14: #{tpu_custom_call.1} parent=11 // pred_check_branch
          %335 = sbr.rel (%p333) target = $region16
        $region15: #{tpu_custom_call.1} parent=11 // pred_region
          %s337 = ssub.s32 1024, 1024
          %338 = vsyncadd [#allocation8], %s337
          %s339 = sshll.u32 [#allocation7], 4
          %s340 = int_to_ptr.vmem [resolvable:$true] %s339
          %345 = dma.hbm_to_vmem [thread:$0]  %s1, 1024, %s340, [#allocation8], 64, 64, 4
        $region16: #{tpu_custom_call.1} parent=11 // pred_fallthru
          _
        // Predicated region
        $region17: #{tpu_custom_call.1} parent=11 // pred_check
          %p346 = pneg %p80
        $region18: #{tpu_custom_call.1} parent=11 // pred_check_branch
          %348 = sbr.rel (%p346) target = $region20
        $region19: #{tpu_custom_call.1} parent=11 // pred_region
          _
        $region20: #{tpu_custom_call.1} parent=11 // pred_fallthru
          _
        // Predicated region
        $region21: #{tpu_custom_call.1} parent=11 // pred_check
          %p349 = pneg %p101
        $region22: #{tpu_custom_call.1} parent=11 // pred_check_branch
          %351 = sbr.rel (%p349) target = $region24
        $region23: #{tpu_custom_call.1} parent=11 // pred_region
          _
        $region24: #{tpu_custom_call.1} parent=11 // pred_fallthru
          _
        // Predicated region
        $region25: #{tpu_custom_call.1} parent=11 // pred_check
          %p352 = pneg %p122
        $region26: #{tpu_custom_call.1} parent=11 // pred_check_branch
          %354 = sbr.rel (%p352) target = $region28
        $region27: #{tpu_custom_call.1} parent=11 // pred_region
          _
        $region28: #{tpu_custom_call.1} parent=11 // pred_fallthru
          _
        // Predicated region
        $region29: #{tpu_custom_call.1} parent=11 // pred_check
          %p355 = pneg %p143
        $region30: #{tpu_custom_call.1} parent=11 // pred_check_branch
          %357 = sbr.rel (%p355) target = $region32
        $region31: #{tpu_custom_call.1} parent=11 // pred_region
          _
        $region32: #{tpu_custom_call.1} parent=11 // pred_fallthru
          _
        // Predicated region
        $region33: #{tpu_custom_call.1} parent=11 // pred_check
          %p358 = pneg %p164
        $region34: #{tpu_custom_call.1} parent=11 // pred_check_branch
          %360 = sbr.rel (%p358) target = $region36
        $region35: #{tpu_custom_call.1} parent=11 // pred_region
          _
        $region36: #{tpu_custom_call.1} parent=11 // pred_fallthru
          _
        // Predicated region
        $region37: #{tpu_custom_call.1} parent=11 // pred_check
          %p361 = pneg %p185
        $region38: #{tpu_custom_call.1} parent=11 // pred_check_branch
          %363 = sbr.rel (%p361) target = $region40
        $region39: #{tpu_custom_call.1} parent=11 // pred_region
          _
        $region40: #{tpu_custom_call.1} parent=11 // pred_fallthru
          _
        // Predicated region
        $region41: #{tpu_custom_call.1} parent=11 // pred_check
          %p364 = pneg %p206
        $region42: #{tpu_custom_call.1} parent=11 // pred_check_branch
          %366 = sbr.rel (%p364) target = $region44
        $region43: #{tpu_custom_call.1} parent=11 // pred_region
          _
        $region44: #{tpu_custom_call.1} parent=11 // pred_fallthru
          _
        // Predicated region
        $region45: #{tpu_custom_call.1} parent=11 // pred_check
          %p367 = pneg %p227
        $region46: #{tpu_custom_call.1} parent=11 // pred_check_branch
          %369 = sbr.rel (%p367) target = $region48
        $region47: #{tpu_custom_call.1} parent=11 // pred_region
          _
        $region48: #{tpu_custom_call.1} parent=11 // pred_fallthru
          _
        // Predicated region
        $region49: #{tpu_custom_call.1} parent=11 // pred_check
          %p370 = pneg %p248
        $region50: #{tpu_custom_call.1} parent=11 // pred_check_branch
          %372 = sbr.rel (%p370) target = $region52
        $region51: #{tpu_custom_call.1} parent=11 // pred_region
          _
        $region52: #{tpu_custom_call.1} parent=11 // pred_fallthru
          _
        // Predicated region
        $region53: #{tpu_custom_call.1} parent=11 // pred_check
          %p373 = pneg %p269
        $region54: #{tpu_custom_call.1} parent=11 // pred_check_branch
          %375 = sbr.rel (%p373) target = $region56
        $region55: #{tpu_custom_call.1} parent=11 // pred_region
          %s377 = ssub.s32 1024, 1024
          %378 = vsyncadd [#allocation11], %s377
          %s379 = sshll.u32 [#allocation10], 4
          %s380 = int_to_ptr.vmem [resolvable:$true] %s379
          %385 = dma.hbm_to_vmem [thread:$0]  %s11, 1024, %s380, [#allocation11], 64, 64, 4
        $region56: #{tpu_custom_call.1} parent=11 // pred_fallthru
          _
        // Predicated region
        $region57: #{tpu_custom_call.1} parent=11 // pred_check
          %p386 = pneg %p290
        $region58: #{tpu_custom_call.1} parent=11 // pred_check_branch
          %388 = sbr.rel (%p386) target = $region60
        $region59: #{tpu_custom_call.1} parent=11 // pred_region
          _
        $region60: #{tpu_custom_call.1} parent=11 // pred_fallthru
          _
      $region12: #{tpu_custom_call.1} parent=5 // pred_fallthru
        _
      %p389 = scmp.lt.s32.totalorder %s26, 6
      // Predicated region
      $region61: #{tpu_custom_call.1} parent=5 // pred_check
        %p390 = pneg %p389
      $region62: #{tpu_custom_call.1} parent=5 // pred_check_branch
        %392 = sbr.rel (%p390) target = $region64
      $region63: #{tpu_custom_call.1} parent=5 // pred_region
        _
      $region64: #{tpu_custom_call.1} parent=5 // pred_fallthru
        _
      %p393 = scmp.le.s32.totalorder 1, %s26
      %p394 = scmp.lt.s32.totalorder %s26, 7
      %p395 = pnand %p393, %p394
      %p396 = pneg %p395
      // Predicated region
      $region65: #{tpu_custom_call.1} parent=5 // pred_check
        _
      $region66: #{tpu_custom_call.1} parent=5 // pred_check_branch
        %398 = sbr.rel (%p395) target = $region68
      $region67: #{tpu_custom_call.1} parent=5 // pred_region
        %s399 = ssub.s32 %s26, 1
        // Predicated region
        $region69: #{tpu_custom_call.1} parent=67 // pred_check
          %p400 = pneg %p59
        $region70: #{tpu_custom_call.1} parent=67 // pred_check_branch
          %402 = sbr.rel (%p400) target = $region72
        $region71: #{tpu_custom_call.1} parent=67 // pred_region
          %403 = dma.done [#allocation8], 1024
        $region72: #{tpu_custom_call.1} parent=67 // pred_fallthru
          _
        // Predicated region
        $region73: #{tpu_custom_call.1} parent=67 // pred_check
          %p404 = pneg %p269
        $region74: #{tpu_custom_call.1} parent=67 // pred_check_branch
          %406 = sbr.rel (%p404) target = $region76
        $region75: #{tpu_custom_call.1} parent=67 // pred_region
          %407 = dma.done [#allocation11], 1024
        $region76: #{tpu_custom_call.1} parent=67 // pred_fallthru
          _
        %p408 = pneg %p59
        %p409 = pneg %p56
        %p410 = pneg %p80
        %p411 = pneg %p77
        %p412 = pneg %p101
        %p413 = pneg %p98
        %p414 = pneg %p122
        %p415 = pneg %p119
        %p416 = pneg %p143
        %p417 = pneg %p140
        %p418 = pneg %p164
        %p419 = pneg %p161
        %p420 = pneg %p185
        %p421 = pneg %p182
        %p422 = pneg %p206
        %p423 = pneg %p203
        %p424 = pneg %p227
        %p425 = pneg %p224
        %p426 = pneg %p248
        %p427 = pneg %p245
        %p428 = pneg %p269
        %p429 = pneg %p266
        %p430 = pneg %p290
        %p431 = pneg %p287
        %p432 = pneg %p318
        %p433 = pneg %p315
        %s434 = sand.u32 %s305, 1
        %s435 = scalar_lea.sflag [#allocation9], %s434
        %s436 = sand.u32 %s305, 1
        %s437 = smul.addr %s436, 64
        %s438 = scalar_lea.vmem [#allocation12], %s437
        %s439 = smul.u32 8, %s36
        %s441 = sld [smem:[#allocation5]]
        %s442 = sld [smem:[#allocation6]]
        %s443 = sand.u32 %s36, 1
        %s444 = sadd.s32 %s36, 1
        %s445 = sand.u32 %s444, 1
        %p446 = scmp.eq.s32.totalorder %s36, 0
        // Predicated region
        $region77: #{tpu_custom_call.1} parent=67 // pred_check
          %p447 = pneg %p446
        $region78: #{tpu_custom_call.1} parent=67 // pred_check_branch
          %449 = sbr.rel (%p447) target = $region80
        $region79: #{tpu_custom_call.1} parent=67 // pred_region
          %s450 = smul.u32 %s35, 26
          %s451 = sadd.s32 0, %s450
          %s452 = smul.addr %s451, 64
          %s453 = scalar_lea.hbm %s0, %s452
          // Predicated region
          $region81: #{tpu_custom_call.1} parent=79 // pred_check
            _
          $region82: #{tpu_custom_call.1} parent=79 // pred_check_branch
            %455 = sbr.rel target = $region84
          $region83: #{tpu_custom_call.1} parent=79 // pred_region
            %456 = sst [smem:[#allocation15]] [#allocation14]
            %457 = sst [smem:[#allocation16]] [#allocation13]
          $region84: #{tpu_custom_call.1} parent=79 // pred_fallthru
            _
          %459 = shalt.err (0)
          %s461 = sshll.u32 [#allocation2], 4
          %s462 = int_to_ptr.vmem [resolvable:$true] %s461
          %464 = dma.hbm_to_vmem [thread:$0]  %s453, 640, %s462, [#allocation4]
        $region80: #{tpu_custom_call.1} parent=67 // pred_fallthru
          _
        %p465 = scmp.lt.s32.totalorder %s444, 3
        // Predicated region
        $region85: #{tpu_custom_call.1} parent=67 // pred_check
          %p466 = pneg %p465
        $region86: #{tpu_custom_call.1} parent=67 // pred_check_branch
          %468 = sbr.rel (%p466) target = $region88
        $region87: #{tpu_custom_call.1} parent=67 // pred_region
          %s469 = smul.u32 %s444, 64
          %s470 = sshra.s32 %s469, 3
          %s471 = sand.u32 %s469, 7
          %s472 = smul.u32 %s35, 26
          %s473 = sadd.s32 %s470, %s472
          %s474 = smul.addr %s473, 64
          %s475 = scalar_lea.hbm %s0, %s474
          %s476 = smul.u32 %s445, 10
          %s477 = smul.addr %s476, 4
          %s478 = scalar_lea.vmem [#allocation2], %s477
          %s479 = scalar_lea.sflag [#allocation4], %s445
          // Predicated region
          $region89: #{tpu_custom_call.1} parent=87 // pred_check
            _
          $region90: #{tpu_custom_call.1} parent=87 // pred_check_branch
            %481 = sbr.rel target = $region92
          $region91: #{tpu_custom_call.1} parent=87 // pred_region
            %482 = sst [smem:[#allocation15]] [#allocation18]
            %483 = sst [smem:[#allocation16]] [#allocation17]
          $region92: #{tpu_custom_call.1} parent=87 // pred_fallthru
            _
          %485 = shalt.err (0)
          %s487 = sshll.u32 %s478, 4
          %s488 = int_to_ptr.vmem [resolvable:$true] %s487
          %490 = dma.hbm_to_vmem [thread:$0]  %s475, 640, %s488, %s479
        $region88: #{tpu_custom_call.1} parent=67 // pred_fallthru
          _
        %s491 = smul.u32 %s36, 64
        %s492 = smul.u32 %s443, 10
        %s493 = smul.addr %s492, 4
        %s494 = scalar_lea.vmem [#allocation2], %s493
        %s495 = scalar_lea.sflag [#allocation4], %s443
        %s496 = smul.u32 4, 10
        %s497 = smul.u32 %s496, 1
        %s498 = sshll.u32 %s497, 4
        %499 = dma.done %s495, %s498
        %v500 = vld [vmem:[%s494] sm:$0xf]
        %v501 = vld [vmem:[%s494 + $0x4] sm:$0xf]
        %v502 = vld [vmem:[%s494 + $0x8] sm:$0xf]
        %v503 = vld [vmem:[%s494 + $0xc] sm:$0xf]
        %v504 = vld [vmem:[%s494 + $0x10] sm:$0xf]
        %v505 = vld [vmem:[%s494 + $0x14] sm:$0xf]
        %v506 = vld [vmem:[%s494 + $0x18] sm:$0xf]
        %v507 = vld [vmem:[%s494 + $0x1c] sm:$0xf]
        %v508 = vld [vmem:[%s494 + $0x20] sm:$0xf]
        %v509 = vld [vmem:[%s494 + $0x24] sm:$0xf]
        %v510 = vld [vmem:[#allocation7] sm:$0xf]
        %v511 = vld [vmem:[#allocation7 + $0x4] sm:$0xf]
        %v512 = vld [vmem:[#allocation7 + $0x8] sm:$0xf]
        %v513 = vld [vmem:[#allocation7 + $0xc] sm:$0xf]
        %v514 = vld [vmem:[#allocation7 + $0x10] sm:$0xf]
        %v515 = vld [vmem:[#allocation7 + $0x14] sm:$0xf]
        %v516 = vld [vmem:[#allocation7 + $0x18] sm:$0xf]
        %v517 = vld [vmem:[#allocation7 + $0x1c] sm:$0xf]
        %v518 = vld [vmem:[#allocation7 + $0x20] sm:$0xf]
        %v519 = vld [vmem:[#allocation7 + $0x24] sm:$0xf]
        %v520 = vld [vmem:[#allocation7 + $0x28] sm:$0xf]
        %v521 = vld [vmem:[#allocation7 + $0x2c] sm:$0xf]
        %v522 = vld [vmem:[#allocation7 + $0x30] sm:$0xf]
        %v523 = vld [vmem:[#allocation7 + $0x34] sm:$0xf]
        %v524 = vld [vmem:[#allocation7 + $0x38] sm:$0xf]
        %v525 = vld [vmem:[#allocation7 + $0x3c] sm:$0xf]
        %v526 = vld [vmem:[%s2] sm:$0x1]
        %v528 = vlaneseq
        %v529 = vshrl.u32 %v528, 7
        %v530 = vsub.s32 0, %v529
        %v531 = vrot.slane %v526, %v530
        %v543 = vunpack.c.l.b16 %v500
        %v544 = vunpack.c.l.b16 %v501
        %v545 = vunpack.c.l.b16 %v502
        %v546 = vunpack.c.l.b16 %v503
        %v547 = vunpack.c.l.b16 %v504
        %v548 = vunpack.c.l.b16 %v505
        %v549 = vunpack.c.l.b16 %v506
        %v550 = vunpack.c.l.b16 %v507
        %v551 = vunpack.c.l.b16 %v508
        %v552 = vunpack.c.l.b16 %v509
        %v553 = vpack.c.b16 %v544, %v543
        %v554 = vpack.c.b16 %v546, %v545
        %v555 = vpack.c.b16 %v548, %v547
        %v556 = vpack.c.b16 %v550, %v549
        %v557 = vpack.c.b16 %v552, %v551
        %v579 = vunpack.c.l.b16 %v510
        %v580 = vunpack.c.l.b16 %v511
        %v581 = vunpack.c.l.b16 %v512
        %v582 = vunpack.c.l.b16 %v513
        %v583 = vunpack.c.l.b16 %v514
        %v584 = vunpack.c.l.b16 %v515
        %v585 = vunpack.c.l.b16 %v516
        %v586 = vunpack.c.l.b16 %v517
        %v587 = vunpack.c.l.b16 %v518
        %v588 = vunpack.c.l.b16 %v519
        %v589 = vunpack.c.l.b16 %v520
        %v590 = vunpack.c.l.b16 %v521
        %v591 = vunpack.c.l.b16 %v522
        %v592 = vunpack.c.l.b16 %v523
        %v593 = vunpack.c.l.b16 %v524
        %v594 = vunpack.c.l.b16 %v525
        %v595 = vpack.c.b16 %v580, %v579
        %v596 = vpack.c.b16 %v582, %v581
        %v597 = vpack.c.b16 %v584, %v583
        %v598 = vpack.c.b16 %v586, %v585
        %v599 = vpack.c.b16 %v588, %v587
        %v600 = vpack.c.b16 %v590, %v589
        %v601 = vpack.c.b16 %v592, %v591
        %v602 = vpack.c.b16 %v594, %v593
        %611 = vmatprep.subr.bf16.mxu0 0
        %612 = vmatpush1.bf16.msra.mxu0 %v602
        %613 = vmatprep.subr.bf16.mxu0 0
        %614 = vmatpush1.bf16.msra.mxu0 %v601
        %615 = vmatprep.subr.bf16.mxu0 0
        %616 = vmatpush1.bf16.msra.mxu0 %v600
        %617 = vmatprep.subr.bf16.mxu0 0
        %618 = vmatpush1.bf16.msra.mxu0 %v599
        %619 = vmatprep.subr.bf16.mxu0 0
        %620 = vmatpush1.bf16.msra.mxu0 %v598
        %621 = vmatprep.subr.bf16.mxu0 0
        %622 = vmatpush1.bf16.msra.mxu0 %v597
        %623 = vmatprep.subr.bf16.mxu0 0
        %624 = vmatpush1.bf16.msra.mxu0 %v596
        %625 = vmatprep.subr.bf16.mxu0 0
        %626 = vmatpush1.bf16.msra.mxu0 %v595
        %627 = vmatprep.subr.bf16.mxu0 0
        %628 = vmatpush2.bf16.msra.mxu0 0
        %629 = vmatprep.subr.bf16.mxu0 0
        %630 = vmatpush2.bf16.msra.mxu0 0
        %631 = vmatprep.subr.bf16.mxu0 0
        %632 = vmatpush2.bf16.msra.mxu0 0
        %633 = vmatprep.subr.bf16.mxu0 0
        %634 = vmatpush2.bf16.msra.mxu0 0
        %635 = vmatprep.subr.bf16.mxu0 0
        %636 = vmatpush2.bf16.msra.mxu0 0
        %637 = vmatprep.subr.bf16.mxu0 0
        %638 = vmatpush2.bf16.msra.mxu0 0
        %639 = vmatprep.subr.bf16.mxu0 0
        %640 = vmatpush2.bf16.msra.mxu0 0
        %641 = vmatprep.subr.bf16.mxu0 0
        %642 = vmatpush2.bf16.msra.mxu0 0
        %643 = vmatprep.mubr.bf16.mxu0 0
        %644 = vmatmul.mubr.bf16.gmra.mxu0 %v553
        %v645 = vpop.f32.mrf.mxu0
        %v646 = vadd.f32 %v531, %v645
        %v647 = vpop.f32.mrf.mxu0
        %v648 = vpop.f32.mrf.mxu0
        %v649 = vadd.f32 %v531, %v648
        %v650 = vpop.f32.mrf.mxu0
        %651 = vmatprep.mubr.bf16.mxu0 0
        %652 = vmatmul.mubr.bf16.gmra.mxu0 %v554
        %v653 = vpop.f32.mrf.mxu0
        %v654 = vadd.f32 %v531, %v653
        %v655 = vpop.f32.mrf.mxu0
        %v656 = vpop.f32.mrf.mxu0
        %v657 = vadd.f32 %v531, %v656
        %v658 = vpop.f32.mrf.mxu0
        %659 = vmatprep.mubr.bf16.mxu0 0
        %660 = vmatmul.mubr.bf16.gmra.mxu0 %v555
        %v661 = vpop.f32.mrf.mxu0
        %v662 = vadd.f32 %v531, %v661
        %v663 = vpop.f32.mrf.mxu0
        %v664 = vpop.f32.mrf.mxu0
        %v665 = vadd.f32 %v531, %v664
        %v666 = vpop.f32.mrf.mxu0
        %667 = vmatprep.mubr.bf16.mxu0 0
        %668 = vmatmul.mubr.bf16.gmra.mxu0 %v556
        %v669 = vpop.f32.mrf.mxu0
        %v670 = vadd.f32 %v531, %v669
        %v671 = vpop.f32.mrf.mxu0
        %v672 = vpop.f32.mrf.mxu0
        %v673 = vadd.f32 %v531, %v672
        %v674 = vpop.f32.mrf.mxu0
        %675 = vmatprep.mubr.bf16.mxu0 0
        %676 = vmatmul.mubr.bf16.gmra.mxu0 %v557
        %v677 = vpop.f32.mrf.mxu0
        %v678 = vadd.f32 %v531, %v677
        %v679 = vpop.f32.mrf.mxu0
        %v680 = vpop.f32.mrf.mxu0
        %v681 = vadd.f32 %v531, %v680
        %v682 = vpop.f32.mrf.mxu0
        %683 = vdwg.mxu0
        %vm684 = vcmp.ge.f32.partialorder %v646, 0.0
        %vm685 = vcmp.ge.f32.partialorder %v649, 0.0
        %vm686 = vcmp.ge.f32.partialorder %v654, 0.0
        %vm687 = vcmp.ge.f32.partialorder %v657, 0.0
        %vm688 = vcmp.ge.f32.partialorder %v662, 0.0
        %vm689 = vcmp.ge.f32.partialorder %v665, 0.0
        %vm690 = vcmp.ge.f32.partialorder %v670, 0.0
        %vm691 = vcmp.ge.f32.partialorder %v673, 0.0
        %vm692 = vcmp.ge.f32.partialorder %v678, 0.0
        %vm693 = vcmp.ge.f32.partialorder %v681, 0.0
        %v694 = vstv %s441
        %v695 = vmul.f32 %v694, %v646
        %v696 = vmul.f32 %v694, %v649
        %v697 = vmul.f32 %v694, %v654
        %v698 = vmul.f32 %v694, %v657
        %v699 = vmul.f32 %v694, %v662
        %v700 = vmul.f32 %v694, %v665
        %v701 = vmul.f32 %v694, %v670
        %v702 = vmul.f32 %v694, %v673
        %v703 = vmul.f32 %v694, %v678
        %v704 = vmul.f32 %v694, %v681
        %v705 = vsel %vm684, %v646, %v695
        %v706 = vsel %vm685, %v649, %v696
        %v707 = vsel %vm686, %v654, %v697
        %v708 = vsel %vm687, %v657, %v698
        %v709 = vsel %vm688, %v662, %v699
        %v710 = vsel %vm689, %v665, %v700
        %v711 = vsel %vm690, %v670, %v701
        %v712 = vsel %vm691, %v673, %v702
        %v713 = vsel %vm692, %v678, %v703
        %v714 = vsel %vm693, %v681, %v704
        %v715 = vld [vmem:[%s4] sm:$0x1]
        %v716 = vld [vmem:[%s5] sm:$0x1]
        %717 = vadd.xlane.f32.xlu0 %v705
        %v718 = vpop.xlane.xlu0 %717
        %719 = vadd.xlane.f32.xlu0 %v706
        %v720 = vpop.xlane.xlu0 %719
        %721 = vadd.xlane.f32.xlu0 %v707
        %v722 = vpop.xlane.xlu0 %721
        %723 = vadd.xlane.f32.xlu0 %v708
        %v724 = vpop.xlane.xlu0 %723
        %725 = vadd.xlane.f32.xlu0 %v709
        %v726 = vpop.xlane.xlu0 %725
        %727 = vadd.xlane.f32.xlu0 %v710
        %v728 = vpop.xlane.xlu0 %727
        %729 = vadd.xlane.f32.xlu0 %v711
        %v730 = vpop.xlane.xlu0 %729
        %731 = vadd.xlane.f32.xlu0 %v712
        %v732 = vpop.xlane.xlu0 %731
        %733 = vadd.xlane.f32.xlu0 %v713
        %v734 = vpop.xlane.xlu0 %733
        %735 = vadd.xlane.f32.xlu0 %v714
        %v736 = vpop.xlane.xlu0 %735
        %v737 = vmul.f32 %v718, 0.03125
        %v738 = vmul.f32 %v720, 0.03125
        %v739 = vmul.f32 %v722, 0.03125
        %v740 = vmul.f32 %v724, 0.03125
        %v741 = vmul.f32 %v726, 0.03125
        %v742 = vmul.f32 %v728, 0.03125
        %v743 = vmul.f32 %v730, 0.03125
        %v744 = vmul.f32 %v732, 0.03125
        %v745 = vmul.f32 %v734, 0.03125
        %v746 = vmul.f32 %v736, 0.03125
        %v747 = vsub.f32 %v705, %v737
        %v748 = vsub.f32 %v706, %v738
        %v749 = vsub.f32 %v707, %v739
        %v750 = vsub.f32 %v708, %v740
        %v751 = vsub.f32 %v709, %v741
        %v752 = vsub.f32 %v710, %v742
        %v753 = vsub.f32 %v711, %v743
        %v754 = vsub.f32 %v712, %v744
        %v755 = vsub.f32 %v713, %v745
        %v756 = vsub.f32 %v714, %v746
        %v757 = vmul.f32 %v747, %v747
        %v758 = vmul.f32 %v748, %v748
        %v759 = vmul.f32 %v749, %v749
        %v760 = vmul.f32 %v750, %v750
        %v761 = vmul.f32 %v751, %v751
        %v762 = vmul.f32 %v752, %v752
        %v763 = vmul.f32 %v753, %v753
        %v764 = vmul.f32 %v754, %v754
        %v765 = vmul.f32 %v755, %v755
        %v766 = vmul.f32 %v756, %v756
        %v767 = vlaneseq
        %v768 = vand.u32 %v767, 127
        %vm769 = vcmp.lt.s32.totalorder %v768, 32
        %v770 = vsel %vm769, 1, 0
        %vm771 = vcmp.eq.s32.totalorder %v770, 1
        %v772 = vsel %vm771, %v757, 0.0
        %v773 = vsel %vm771, %v758, 0.0
        %v774 = vsel %vm771, %v759, 0.0
        %v775 = vsel %vm771, %v760, 0.0
        %v776 = vsel %vm771, %v761, 0.0
        %v777 = vsel %vm771, %v762, 0.0
        %v778 = vsel %vm771, %v763, 0.0
        %v779 = vsel %vm771, %v764, 0.0
        %v780 = vsel %vm771, %v765, 0.0
        %v781 = vsel %vm771, %v766, 0.0
        %782 = vadd.xlane.f32.xlu0 %v772
        %v783 = vpop.xlane.xlu0 %782
        %784 = vadd.xlane.f32.xlu0 %v773
        %v785 = vpop.xlane.xlu0 %784
        %786 = vadd.xlane.f32.xlu0 %v774
        %v787 = vpop.xlane.xlu0 %786
        %788 = vadd.xlane.f32.xlu0 %v775
        %v789 = vpop.xlane.xlu0 %788
        %790 = vadd.xlane.f32.xlu0 %v776
        %v791 = vpop.xlane.xlu0 %790
        %792 = vadd.xlane.f32.xlu0 %v777
        %v793 = vpop.xlane.xlu0 %792
        %794 = vadd.xlane.f32.xlu0 %v778
        %v795 = vpop.xlane.xlu0 %794
        %796 = vadd.xlane.f32.xlu0 %v779
        %v797 = vpop.xlane.xlu0 %796
        %798 = vadd.xlane.f32.xlu0 %v780
        %v799 = vpop.xlane.xlu0 %798
        %800 = vadd.xlane.f32.xlu0 %v781
        %v801 = vpop.xlane.xlu0 %800
        %v802 = vmul.f32 %v783, 0.03125
        %v803 = vmul.f32 %v785, 0.03125
        %v804 = vmul.f32 %v787, 0.03125
        %v805 = vmul.f32 %v789, 0.03125
        %v806 = vmul.f32 %v791, 0.03125
        %v807 = vmul.f32 %v793, 0.03125
        %v808 = vmul.f32 %v795, 0.03125
        %v809 = vmul.f32 %v797, 0.03125
        %v810 = vmul.f32 %v799, 0.03125
        %v811 = vmul.f32 %v801, 0.03125
        %v812 = vadd.f32 %v802, 1e-05
        %v813 = vadd.f32 %v803, 1e-05
        %v814 = vadd.f32 %v804, 1e-05
        %v815 = vadd.f32 %v805, 1e-05
        %v816 = vadd.f32 %v806, 1e-05
        %v817 = vadd.f32 %v807, 1e-05
        %v818 = vadd.f32 %v808, 1e-05
        %v819 = vadd.f32 %v809, 1e-05
        %v820 = vadd.f32 %v810, 1e-05
        %v821 = vadd.f32 %v811, 1e-05
        %v822 = vrsqrt.pop %v812
        %v823 = vrsqrt.pop %v813
        %v824 = vrsqrt.pop %v814
        %v825 = vrsqrt.pop %v815
        %v826 = vrsqrt.pop %v816
        %v827 = vrsqrt.pop %v817
        %v828 = vrsqrt.pop %v818
        %v829 = vrsqrt.pop %v819
        %v830 = vrsqrt.pop %v820
        %v831 = vrsqrt.pop %v821
        %v833 = vlaneseq
        %v834 = vshrl.u32 %v833, 7
        %v835 = vsub.s32 0, %v834
        %v836 = vrot.slane %v715, %v835
        %v838 = vmul.f32 %v822, %v836
        %v839 = vmul.f32 %v823, %v836
        %v840 = vmul.f32 %v824, %v836
        %v841 = vmul.f32 %v825, %v836
        %v842 = vmul.f32 %v826, %v836
        %v843 = vmul.f32 %v827, %v836
        %v844 = vmul.f32 %v828, %v836
        %v845 = vmul.f32 %v829, %v836
        %v846 = vmul.f32 %v830, %v836
        %v847 = vmul.f32 %v831, %v836
        %v848 = vmul.f32 %v747, %v838
        %v849 = vmul.f32 %v748, %v839
        %v850 = vmul.f32 %v749, %v840
        %v851 = vmul.f32 %v750, %v841
        %v852 = vmul.f32 %v751, %v842
        %v853 = vmul.f32 %v752, %v843
        %v854 = vmul.f32 %v753, %v844
        %v855 = vmul.f32 %v754, %v845
        %v856 = vmul.f32 %v755, %v846
        %v857 = vmul.f32 %v756, %v847
        %v859 = vlaneseq
        %v860 = vshrl.u32 %v859, 7
        %v861 = vsub.s32 0, %v860
        %v862 = vrot.slane %v716, %v861
        %v864 = vadd.f32 %v848, %v862
        %v865 = vadd.f32 %v849, %v862
        %v866 = vadd.f32 %v850, %v862
        %v867 = vadd.f32 %v851, %v862
        %v868 = vadd.f32 %v852, %v862
        %v869 = vadd.f32 %v853, %v862
        %v870 = vadd.f32 %v854, %v862
        %v871 = vadd.f32 %v855, %v862
        %v872 = vadd.f32 %v856, %v862
        %v873 = vadd.f32 %v857, %v862
        %v874 = vpack.c.bf16 %v865, %v864
        %v875 = vpack.c.bf16 %v867, %v866
        %v876 = vpack.c.bf16 %v869, %v868
        %v877 = vpack.c.bf16 %v871, %v870
        %v878 = vpack.c.bf16 %v873, %v872
        %v884 = vunpack.c.l.b16 %v874
        %v885 = vunpack.c.h.b16 %v874
        %v886 = vunpack.c.l.b16 %v875
        %v887 = vunpack.c.h.b16 %v875
        %v888 = vunpack.c.l.b16 %v876
        %v889 = vunpack.c.h.b16 %v876
        %v890 = vunpack.c.l.b16 %v877
        %v891 = vunpack.c.h.b16 %v877
        %v892 = vunpack.c.l.b16 %v878
        %v893 = vunpack.c.h.b16 %v878
        %v894 = vpack.c.b16 %v884, %v884
        %v895 = vpack.c.b16 %v885, %v885
        %v896 = vpack.c.b16 %v886, %v886
        %v897 = vpack.c.b16 %v887, %v887
        %v898 = vpack.c.b16 %v888, %v888
        %v899 = vpack.c.b16 %v889, %v889
        %v900 = vpack.c.b16 %v890, %v890
        %v901 = vpack.c.b16 %v891, %v891
        %v902 = vpack.c.b16 %v892, %v892
        %v903 = vpack.c.b16 %v893, %v893
        %914 = vst [vmem:[#allocation3] sm:$0xf] %v894
        %915 = vst [vmem:[#allocation3 + $0x4] sm:$0xf] %v895
        %916 = vst [vmem:[#allocation3 + $0x8] sm:$0xf] %v896
        %917 = vst [vmem:[#allocation3 + $0xc] sm:$0xf] %v897
        %918 = vst [vmem:[#allocation3 + $0x10] sm:$0xf] %v898
        %919 = vst [vmem:[#allocation3 + $0x14] sm:$0xf] %v899
        %920 = vst [vmem:[#allocation3 + $0x18] sm:$0xf] %v900
        %921 = vst [vmem:[#allocation3 + $0x1c] sm:$0xf] %v901
        %922 = vst [vmem:[#allocation3 + $0x20] sm:$0xf] %v902
        %923 = vst [vmem:[#allocation3 + $0x24] sm:$0xf] %v903
        %p924 = scmp.lt.s32.totalorder %s491, 8
        %s925 = sadd.s32 %s491, 72
        %p926 = scmp.gt.s32.totalorder %s925, 192
        %p927 = por %p924, %p926
        // Predicated region
        $region93: #{tpu_custom_call.1} parent=67 // pred_check
          %p928 = pneg %p927
        $region94: #{tpu_custom_call.1} parent=67 // pred_check_branch
          %930 = sbr.rel (%p928) target = $region96
        $region95: #{tpu_custom_call.1} parent=67 // pred_region
          %v931 = vlaneseq
          %v932 = vshrl.u32 %v931, 7
          %v933 = vadd.s32 %v932, 8
          %v934 = vadd.s32 %v932, 16
          %v935 = vadd.s32 %v932, 24
          %v936 = vadd.s32 %v932, 32
          %v937 = vadd.s32 %v932, 40
          %v938 = vadd.s32 %v932, 48
          %v939 = vadd.s32 %v932, 56
          %v940 = vadd.s32 %v932, 64
          %v941 = vadd.s32 %v932, 72
          %s942 = ssub.s32 %s491, 8
          %v943 = vstv %s942
          %v944 = vadd.s32 %v932, %v943
          %v945 = vadd.s32 %v933, %v943
          %v946 = vadd.s32 %v934, %v943
          %v947 = vadd.s32 %v935, %v943
          %v948 = vadd.s32 %v936, %v943
          %v949 = vadd.s32 %v937, %v943
          %v950 = vadd.s32 %v938, %v943
          %v951 = vadd.s32 %v939, %v943
          %v952 = vadd.s32 %v940, %v943
          %v953 = vadd.s32 %v941, %v943
          %vm954 = vcmp.ge.s32.totalorder %v944, 0
          %vm955 = vcmp.ge.s32.totalorder %v945, 0
          %vm956 = vcmp.ge.s32.totalorder %v946, 0
          %vm957 = vcmp.ge.s32.totalorder %v947, 0
          %vm958 = vcmp.ge.s32.totalorder %v948, 0
          %vm959 = vcmp.ge.s32.totalorder %v949, 0
          %vm960 = vcmp.ge.s32.totalorder %v950, 0
          %vm961 = vcmp.ge.s32.totalorder %v951, 0
          %vm962 = vcmp.ge.s32.totalorder %v952, 0
          %vm963 = vcmp.ge.s32.totalorder %v953, 0
          %vm964 = vcmp.lt.s32.totalorder %v944, 192
          %vm965 = vcmp.lt.s32.totalorder %v945, 192
          %vm966 = vcmp.lt.s32.totalorder %v946, 192
          %vm967 = vcmp.lt.s32.totalorder %v947, 192
          %vm968 = vcmp.lt.s32.totalorder %v948, 192
          %vm969 = vcmp.lt.s32.totalorder %v949, 192
          %vm970 = vcmp.lt.s32.totalorder %v950, 192
          %vm971 = vcmp.lt.s32.totalorder %v951, 192
          %vm972 = vcmp.lt.s32.totalorder %v952, 192
          %vm973 = vcmp.lt.s32.totalorder %v953, 192
          %vm974 = vmand %vm954, %vm964
          %vm975 = vmand %vm955, %vm965
          %vm976 = vmand %vm956, %vm966
          %vm977 = vmand %vm957, %vm967
          %vm978 = vmand %vm958, %vm968
          %vm979 = vmand %vm959, %vm969
          %vm980 = vmand %vm960, %vm970
          %vm981 = vmand %vm961, %vm971
          %vm982 = vmand %vm962, %vm972
          %vm983 = vmand %vm963, %vm973
          %v984 = vld [vmem:[#allocation3] sm:$0xf]
          %v985 = vld [vmem:[#allocation3 + $0x4] sm:$0xf]
          %v986 = vld [vmem:[#allocation3 + $0x8] sm:$0xf]
          %v987 = vld [vmem:[#allocation3 + $0xc] sm:$0xf]
          %v988 = vld [vmem:[#allocation3 + $0x10] sm:$0xf]
          %v989 = vld [vmem:[#allocation3 + $0x14] sm:$0xf]
          %v990 = vld [vmem:[#allocation3 + $0x18] sm:$0xf]
          %v991 = vld [vmem:[#allocation3 + $0x1c] sm:$0xf]
          %v992 = vld [vmem:[#allocation3 + $0x20] sm:$0xf]
          %v993 = vld [vmem:[#allocation3 + $0x24] sm:$0xf]
          %v994 = vsel %vm974, 1, 0
          %v995 = vsel %vm975, 1, 0
          %v996 = vsel %vm976, 1, 0
          %v997 = vsel %vm977, 1, 0
          %v998 = vsel %vm978, 1, 0
          %v999 = vsel %vm979, 1, 0
          %v1000 = vsel %vm980, 1, 0
          %v1001 = vsel %vm981, 1, 0
          %v1002 = vsel %vm982, 1, 0
          %v1003 = vsel %vm983, 1, 0
          %vm1004 = vcmp.eq.s32.totalorder %v994, 1
          %vm1005 = vcmp.eq.s32.totalorder %v995, 1
          %vm1006 = vcmp.eq.s32.totalorder %v996, 1
          %vm1007 = vcmp.eq.s32.totalorder %v997, 1
          %vm1008 = vcmp.eq.s32.totalorder %v998, 1
          %vm1009 = vcmp.eq.s32.totalorder %v999, 1
          %vm1010 = vcmp.eq.s32.totalorder %v1000, 1
          %vm1011 = vcmp.eq.s32.totalorder %v1001, 1
          %vm1012 = vcmp.eq.s32.totalorder %v1002, 1
          %vm1013 = vcmp.eq.s32.totalorder %v1003, 1
          %vm1014 = vmpackc.low %vm1004, %vm1004
          %vm1015 = vmpackc.low %vm1005, %vm1005
          %vm1016 = vmpackc.low %vm1006, %vm1006
          %vm1017 = vmpackc.low %vm1007, %vm1007
          %vm1018 = vmpackc.low %vm1008, %vm1008
          %vm1019 = vmpackc.low %vm1009, %vm1009
          %vm1020 = vmpackc.low %vm1010, %vm1010
          %vm1021 = vmpackc.low %vm1011, %vm1011
          %vm1022 = vmpackc.low %vm1012, %vm1012
          %vm1023 = vmpackc.low %vm1013, %vm1013
          %v1024 = vsel %vm1014, %v984, 0
          %v1025 = vsel %vm1015, %v985, 0
          %v1026 = vsel %vm1016, %v986, 0
          %v1027 = vsel %vm1017, %v987, 0
          %v1028 = vsel %vm1018, %v988, 0
          %v1029 = vsel %vm1019, %v989, 0
          %v1030 = vsel %vm1020, %v990, 0
          %v1031 = vsel %vm1021, %v991, 0
          %v1032 = vsel %vm1022, %v992, 0
          %v1033 = vsel %vm1023, %v993, 0
          %1034 = vst [vmem:[#allocation3] sm:$0xf] %v1024
          %1035 = vst [vmem:[#allocation3 + $0x4] sm:$0xf] %v1025
          %1036 = vst [vmem:[#allocation3 + $0x8] sm:$0xf] %v1026
          %1037 = vst [vmem:[#allocation3 + $0xc] sm:$0xf] %v1027
          %1038 = vst [vmem:[#allocation3 + $0x10] sm:$0xf] %v1028
          %1039 = vst [vmem:[#allocation3 + $0x14] sm:$0xf] %v1029
          %1040 = vst [vmem:[#allocation3 + $0x18] sm:$0xf] %v1030
          %1041 = vst [vmem:[#allocation3 + $0x1c] sm:$0xf] %v1031
          %1042 = vst [vmem:[#allocation3 + $0x20] sm:$0xf] %v1032
          %1043 = vst [vmem:[#allocation3 + $0x24] sm:$0xf] %v1033
        $region96: #{tpu_custom_call.1} parent=67 // pred_fallthru
          _
        %v1044 = vld [vmem:[#allocation3] sm:$0x8]
        %v1045 = vld [vmem:[#allocation3 + $0x4] sm:$0xf]
        %v1046 = vld [vmem:[#allocation3 + $0x8] sm:$0xf]
        %v1047 = vld [vmem:[#allocation3 + $0xc] sm:$0xf]
        %v1048 = vld [vmem:[#allocation3 + $0x10] sm:$0xf]
        %v1049 = vld [vmem:[#allocation3 + $0x14] sm:$0xf]
        %v1050 = vld [vmem:[#allocation3 + $0x18] sm:$0xf]
        %v1051 = vld [vmem:[#allocation3 + $0x1c] sm:$0xf]
        %v1052 = vld [vmem:[#allocation3 + $0x20] sm:$0x7]
        %v1053 = vunpack.c.l.bf16 %v1044
        %v1054 = vunpack.c.l.bf16 %v1045
        %v1055 = vunpack.c.l.bf16 %v1046
        %v1056 = vunpack.c.l.bf16 %v1047
        %v1057 = vunpack.c.l.bf16 %v1048
        %v1058 = vunpack.c.l.bf16 %v1049
        %v1059 = vunpack.c.l.bf16 %v1050
        %v1060 = vunpack.c.l.bf16 %v1051
        %v1061 = vunpack.c.l.bf16 %v1052
        %v1062 = vld [vmem:[%s6] sm:$0x1]
        %v1063 = vlaneseq
        %v1064 = vshrl.u32 %v1063, 7
        %v1065 = vsub.s32 0, %v1064
        %v1066 = vrot.slane %v1062, %v1065
        %v1067 = vmul.f32 %v1066, %v1053
        %v1068 = vmul.f32 %v1066, %v1054
        %v1069 = vmul.f32 %v1066, %v1055
        %v1070 = vmul.f32 %v1066, %v1056
        %v1071 = vmul.f32 %v1066, %v1057
        %v1072 = vmul.f32 %v1066, %v1058
        %v1073 = vmul.f32 %v1066, %v1059
        %v1074 = vmul.f32 %v1066, %v1060
        %v1075 = vmul.f32 %v1066, %v1061
        %v1076 = vadd.f32 %v1067, 0.0
        %v1077 = vadd.f32 %v1068, 0.0
        %v1078 = vadd.f32 %v1069, 0.0
        %v1079 = vadd.f32 %v1070, 0.0
        %v1080 = vadd.f32 %v1071, 0.0
        %v1081 = vadd.f32 %v1072, 0.0
        %v1082 = vadd.f32 %v1073, 0.0
        %v1083 = vadd.f32 %v1074, 0.0
        %v1084 = vadd.f32 %v1075, 0.0
        %v1085 = vld [vmem:[#allocation3 + $0x20] sm:$0xf]
        %v1086 = vunpack.c.l.bf16 %v1085
        %v1087 = vld [vmem:[%s6 + $0x1] sm:$0x1]
        %v1088 = vlaneseq
        %v1089 = vshrl.u32 %v1088, 7
        %v1090 = vsub.s32 0, %v1089
        %v1091 = vrot.slane %v1087, %v1090
        %v1092 = vmul.f32 %v1091, %v1054
        %v1093 = vmul.f32 %v1091, %v1055
        %v1094 = vmul.f32 %v1091, %v1056
        %v1095 = vmul.f32 %v1091, %v1057
        %v1096 = vmul.f32 %v1091, %v1058
        %v1097 = vmul.f32 %v1091, %v1059
        %v1098 = vmul.f32 %v1091, %v1060
        %v1099 = vmul.f32 %v1091, %v1086
        %vm1108 = vcmask 1045504
        %v1109 = vrot.slane %v1092, 2
        %v1110 = vrot.slane %v1093, 2
        %v1111 = vsel %vm1108, %v1109, %v1110
        %v1112 = vrot.slane %v1094, 2
        %v1113 = vsel %vm1108, %v1110, %v1112
        %v1114 = vrot.slane %v1095, 2
        %v1115 = vsel %vm1108, %v1112, %v1114
        %v1116 = vrot.slane %v1096, 2
        %v1117 = vsel %vm1108, %v1114, %v1116
        %v1118 = vrot.slane %v1097, 2
        %v1119 = vsel %vm1108, %v1116, %v1118
        %v1120 = vrot.slane %v1098, 2
        %v1121 = vsel %vm1108, %v1118, %v1120
        %v1122 = vrot.slane %v1099, 2
        %v1123 = vsel %vm1108, %v1120, %v1122
        %v1133 = vadd.f32 %v1076, %v1109
        %v1134 = vadd.f32 %v1077, %v1111
        %v1135 = vadd.f32 %v1078, %v1113
        %v1136 = vadd.f32 %v1079, %v1115
        %v1137 = vadd.f32 %v1080, %v1117
        %v1138 = vadd.f32 %v1081, %v1119
        %v1139 = vadd.f32 %v1082, %v1121
        %v1140 = vadd.f32 %v1083, %v1123
        %v1141 = vadd.f32 %v1084, %v1122
        %v1142 = vld [vmem:[#allocation3 + $0x4] sm:$0xe]
        %v1143 = vld [vmem:[#allocation3 + $0x8] sm:$0xf]
        %v1144 = vld [vmem:[#allocation3 + $0xc] sm:$0xf]
        %v1145 = vld [vmem:[#allocation3 + $0x10] sm:$0xf]
        %v1146 = vld [vmem:[#allocation3 + $0x14] sm:$0xf]
        %v1147 = vld [vmem:[#allocation3 + $0x18] sm:$0xf]
        %v1148 = vld [vmem:[#allocation3 + $0x1c] sm:$0xf]
        %v1149 = vld [vmem:[#allocation3 + $0x20] sm:$0xf]
        %v1150 = vld [vmem:[#allocation3 + $0x24] sm:$0x1]
        %v1151 = vunpack.c.l.bf16 %v1142
        %v1152 = vunpack.c.l.bf16 %v1143
        %v1153 = vunpack.c.l.bf16 %v1144
        %v1154 = vunpack.c.l.bf16 %v1145
        %v1155 = vunpack.c.l.bf16 %v1146
        %v1156 = vunpack.c.l.bf16 %v1147
        %v1157 = vunpack.c.l.bf16 %v1148
        %v1158 = vunpack.c.l.bf16 %v1149
        %v1159 = vunpack.c.l.bf16 %v1150
        %v1160 = vld [vmem:[%s6 + $0x2] sm:$0x1]
        %v1161 = vlaneseq
        %v1162 = vshrl.u32 %v1161, 7
        %v1163 = vsub.s32 0, %v1162
        %v1164 = vrot.slane %v1160, %v1163
        %v1165 = vmul.f32 %v1164, %v1151
        %v1166 = vmul.f32 %v1164, %v1152
        %v1167 = vmul.f32 %v1164, %v1153
        %v1168 = vmul.f32 %v1164, %v1154
        %v1169 = vmul.f32 %v1164, %v1155
        %v1170 = vmul.f32 %v1164, %v1156
        %v1171 = vmul.f32 %v1164, %v1157
        %v1172 = vmul.f32 %v1164, %v1158
        %v1173 = vmul.f32 %v1164, %v1159
        %vm1183 = vcmask 1043456
        %v1184 = vrot.slane %v1165, 4
        %v1185 = vrot.slane %v1166, 4
        %v1186 = vsel %vm1183, %v1184, %v1185
        %v1187 = vrot.slane %v1167, 4
        %v1188 = vsel %vm1183, %v1185, %v1187
        %v1189 = vrot.slane %v1168, 4
        %v1190 = vsel %vm1183, %v1187, %v1189
        %v1191 = vrot.slane %v1169, 4
        %v1192 = vsel %vm1183, %v1189, %v1191
        %v1193 = vrot.slane %v1170, 4
        %v1194 = vsel %vm1183, %v1191, %v1193
        %v1195 = vrot.slane %v1171, 4
        %v1196 = vsel %vm1183, %v1193, %v1195
        %v1197 = vrot.slane %v1172, 4
        %v1198 = vsel %vm1183, %v1195, %v1197
        %v1199 = vrot.slane %v1173, 4
        %v1200 = vsel %vm1183, %v1197, %v1199
        %v1210 = vadd.f32 %v1133, %v1184
        %v1211 = vadd.f32 %v1134, %v1186
        %v1212 = vadd.f32 %v1135, %v1188
        %v1213 = vadd.f32 %v1136, %v1190
        %v1214 = vadd.f32 %v1137, %v1192
        %v1215 = vadd.f32 %v1138, %v1194
        %v1216 = vadd.f32 %v1139, %v1196
        %v1217 = vadd.f32 %v1140, %v1198
        %v1218 = vadd.f32 %v1141, %v1200
        %v1219 = vld [vmem:[%s7] sm:$0x1]
        %v1221 = vlaneseq
        %v1222 = vshrl.u32 %v1221, 7
        %v1223 = vsub.s32 0, %v1222
        %v1224 = vrot.slane %v1219, %v1223
        %v1226 = vadd.f32 %v1210, %v1224
        %v1227 = vadd.f32 %v1211, %v1224
        %v1228 = vadd.f32 %v1212, %v1224
        %v1229 = vadd.f32 %v1213, %v1224
        %v1230 = vadd.f32 %v1214, %v1224
        %v1231 = vadd.f32 %v1215, %v1224
        %v1232 = vadd.f32 %v1216, %v1224
        %v1233 = vadd.f32 %v1217, %v1224
        %v1234 = vadd.f32 %v1218, %v1224
        %vm1235 = vcmp.ge.f32.partialorder %v1226, 0.0
        %vm1236 = vcmp.ge.f32.partialorder %v1227, 0.0
        %vm1237 = vcmp.ge.f32.partialorder %v1228, 0.0
        %vm1238 = vcmp.ge.f32.partialorder %v1229, 0.0
        %vm1239 = vcmp.ge.f32.partialorder %v1230, 0.0
        %vm1240 = vcmp.ge.f32.partialorder %v1231, 0.0
        %vm1241 = vcmp.ge.f32.partialorder %v1232, 0.0
        %vm1242 = vcmp.ge.f32.partialorder %v1233, 0.0
        %vm1243 = vcmp.ge.f32.partialorder %v1234, 0.0
        %v1244 = vstv %s442
        %v1245 = vmul.f32 %v1244, %v1226
        %v1246 = vmul.f32 %v1244, %v1227
        %v1247 = vmul.f32 %v1244, %v1228
        %v1248 = vmul.f32 %v1244, %v1229
        %v1249 = vmul.f32 %v1244, %v1230
        %v1250 = vmul.f32 %v1244, %v1231
        %v1251 = vmul.f32 %v1244, %v1232
        %v1252 = vmul.f32 %v1244, %v1233
        %v1253 = vmul.f32 %v1244, %v1234
        %v1254 = vsel %vm1235, %v1226, %v1245
        %v1255 = vsel %vm1236, %v1227, %v1246
        %v1256 = vsel %vm1237, %v1228, %v1247
        %v1257 = vsel %vm1238, %v1229, %v1248
        %v1258 = vsel %vm1239, %v1230, %v1249
        %v1259 = vsel %vm1240, %v1231, %v1250
        %v1260 = vsel %vm1241, %v1232, %v1251
        %v1261 = vsel %vm1242, %v1233, %v1252
        %v1262 = vsel %vm1243, %v1234, %v1253
        %v1263 = vld [vmem:[%s9] sm:$0x1]
        %v1264 = vld [vmem:[%s10] sm:$0x1]
        %vm1265 = vcmask 1047558
        %v1266 = vsel %vm1265, %v1254, 0.0
        %1267 = vadd.xlane.f32.xlu0 %v1266
        %v1268 = vpop.xlane.xlu0 %1267
        %1269 = vadd.xlane.f32.xlu0 %v1255
        %v1270 = vpop.xlane.xlu0 %1269
        %1271 = vadd.xlane.f32.xlu0 %v1256
        %v1272 = vpop.xlane.xlu0 %1271
        %1273 = vadd.xlane.f32.xlu0 %v1257
        %v1274 = vpop.xlane.xlu0 %1273
        %1275 = vadd.xlane.f32.xlu0 %v1258
        %v1276 = vpop.xlane.xlu0 %1275
        %1277 = vadd.xlane.f32.xlu0 %v1259
        %v1278 = vpop.xlane.xlu0 %1277
        %1279 = vadd.xlane.f32.xlu0 %v1260
        %v1280 = vpop.xlane.xlu0 %1279
        %1281 = vadd.xlane.f32.xlu0 %v1261
        %v1282 = vpop.xlane.xlu0 %1281
        %v1283 = vsel %vm1108, %v1262, 0.0
        %1284 = vadd.xlane.f32.xlu0 %v1283
        %v1285 = vpop.xlane.xlu0 %1284
        %v1286 = vmul.f32 %v1268, 0.03125
        %v1287 = vmul.f32 %v1270, 0.03125
        %v1288 = vmul.f32 %v1272, 0.03125
        %v1289 = vmul.f32 %v1274, 0.03125
        %v1290 = vmul.f32 %v1276, 0.03125
        %v1291 = vmul.f32 %v1278, 0.03125
        %v1292 = vmul.f32 %v1280, 0.03125
        %v1293 = vmul.f32 %v1282, 0.03125
        %v1294 = vmul.f32 %v1285, 0.03125
        %v1295 = vsub.f32 %v1254, %v1286
        %v1296 = vsub.f32 %v1255, %v1287
        %v1297 = vsub.f32 %v1256, %v1288
        %v1298 = vsub.f32 %v1257, %v1289
        %v1299 = vsub.f32 %v1258, %v1290
        %v1300 = vsub.f32 %v1259, %v1291
        %v1301 = vsub.f32 %v1260, %v1292
        %v1302 = vsub.f32 %v1261, %v1293
        %v1303 = vsub.f32 %v1262, %v1294
        %v1304 = vmul.f32 %v1295, %v1295
        %v1305 = vmul.f32 %v1296, %v1296
        %v1306 = vmul.f32 %v1297, %v1297
        %v1307 = vmul.f32 %v1298, %v1298
        %v1308 = vmul.f32 %v1299, %v1299
        %v1309 = vmul.f32 %v1300, %v1300
        %v1310 = vmul.f32 %v1301, %v1301
        %v1311 = vmul.f32 %v1302, %v1302
        %v1312 = vmul.f32 %v1303, %v1303
        %v1313 = vsel %vm771, %v1304, 0.0
        %v1314 = vsel %vm771, %v1305, 0.0
        %v1315 = vsel %vm771, %v1306, 0.0
        %v1316 = vsel %vm771, %v1307, 0.0
        %v1317 = vsel %vm771, %v1308, 0.0
        %v1318 = vsel %vm771, %v1309, 0.0
        %v1319 = vsel %vm771, %v1310, 0.0
        %v1320 = vsel %vm771, %v1311, 0.0
        %v1321 = vsel %vm771, %v1312, 0.0
        %v1322 = vsel %vm1265, %v1313, 0.0
        %1323 = vadd.xlane.f32.xlu0 %v1322
        %v1324 = vpop.xlane.xlu0 %1323
        %1325 = vadd.xlane.f32.xlu0 %v1314
        %v1326 = vpop.xlane.xlu0 %1325
        %1327 = vadd.xlane.f32.xlu0 %v1315
        %v1328 = vpop.xlane.xlu0 %1327
        %1329 = vadd.xlane.f32.xlu0 %v1316
        %v1330 = vpop.xlane.xlu0 %1329
        %1331 = vadd.xlane.f32.xlu0 %v1317
        %v1332 = vpop.xlane.xlu0 %1331
        %1333 = vadd.xlane.f32.xlu0 %v1318
        %v1334 = vpop.xlane.xlu0 %1333
        %1335 = vadd.xlane.f32.xlu0 %v1319
        %v1336 = vpop.xlane.xlu0 %1335
        %1337 = vadd.xlane.f32.xlu0 %v1320
        %v1338 = vpop.xlane.xlu0 %1337
        %v1339 = vsel %vm1108, %v1321, 0.0
        %1340 = vadd.xlane.f32.xlu0 %v1339
        %v1341 = vpop.xlane.xlu0 %1340
        %v1342 = vmul.f32 %v1324, 0.03125
        %v1343 = vmul.f32 %v1326, 0.03125
        %v1344 = vmul.f32 %v1328, 0.03125
        %v1345 = vmul.f32 %v1330, 0.03125
        %v1346 = vmul.f32 %v1332, 0.03125
        %v1347 = vmul.f32 %v1334, 0.03125
        %v1348 = vmul.f32 %v1336, 0.03125
        %v1349 = vmul.f32 %v1338, 0.03125
        %v1350 = vmul.f32 %v1341, 0.03125
        %v1351 = vadd.f32 %v1342, 1e-05
        %v1352 = vadd.f32 %v1343, 1e-05
        %v1353 = vadd.f32 %v1344, 1e-05
        %v1354 = vadd.f32 %v1345, 1e-05
        %v1355 = vadd.f32 %v1346, 1e-05
        %v1356 = vadd.f32 %v1347, 1e-05
        %v1357 = vadd.f32 %v1348, 1e-05
        %v1358 = vadd.f32 %v1349, 1e-05
        %v1359 = vadd.f32 %v1350, 1e-05
        %v1360 = vrsqrt.pop %v1351
        %v1361 = vrsqrt.pop %v1352
        %v1362 = vrsqrt.pop %v1353
        %v1363 = vrsqrt.pop %v1354
        %v1364 = vrsqrt.pop %v1355
        %v1365 = vrsqrt.pop %v1356
        %v1366 = vrsqrt.pop %v1357
        %v1367 = vrsqrt.pop %v1358
        %v1368 = vrsqrt.pop %v1359
        %v1370 = vlaneseq
        %v1371 = vshrl.u32 %v1370, 7
        %v1372 = vsub.s32 0, %v1371
        %v1373 = vrot.slane %v1263, %v1372
        %v1375 = vmul.f32 %v1360, %v1373
        %v1376 = vmul.f32 %v1361, %v1373
        %v1377 = vmul.f32 %v1362, %v1373
        %v1378 = vmul.f32 %v1363, %v1373
        %v1379 = vmul.f32 %v1364, %v1373
        %v1380 = vmul.f32 %v1365, %v1373
        %v1381 = vmul.f32 %v1366, %v1373
        %v1382 = vmul.f32 %v1367, %v1373
        %v1383 = vmul.f32 %v1368, %v1373
        %v1384 = vmul.f32 %v1295, %v1375
        %v1385 = vmul.f32 %v1296, %v1376
        %v1386 = vmul.f32 %v1297, %v1377
        %v1387 = vmul.f32 %v1298, %v1378
        %v1388 = vmul.f32 %v1299, %v1379
        %v1389 = vmul.f32 %v1300, %v1380
        %v1390 = vmul.f32 %v1301, %v1381
        %v1391 = vmul.f32 %v1302, %v1382
        %v1392 = vmul.f32 %v1303, %v1383
        %v1394 = vlaneseq
        %v1395 = vshrl.u32 %v1394, 7
        %v1396 = vsub.s32 0, %v1395
        %v1397 = vrot.slane %v1264, %v1396
        %v1399 = vadd.f32 %v1384, %v1397
        %v1400 = vadd.f32 %v1385, %v1397
        %v1401 = vadd.f32 %v1386, %v1397
        %v1402 = vadd.f32 %v1387, %v1397
        %v1403 = vadd.f32 %v1388, %v1397
        %v1404 = vadd.f32 %v1389, %v1397
        %v1405 = vadd.f32 %v1390, %v1397
        %v1406 = vadd.f32 %v1391, %v1397
        %v1407 = vadd.f32 %v1392, %v1397
        %v1408 = vpack.c.bf16 %v1400, %v1399
        %v1409 = vpack.c.bf16 %v1402, %v1401
        %v1410 = vpack.c.bf16 %v1404, %v1403
        %v1411 = vpack.c.bf16 %v1406, %v1405
        %v1412 = vpack.c.bf16 %v1407, %v1407
        %v1413 = vld [vmem:[#allocation10] sm:$0xf]
        %v1414 = vld [vmem:[#allocation10 + $0x4] sm:$0xf]
        %v1415 = vld [vmem:[#allocation10 + $0x8] sm:$0xf]
        %v1416 = vld [vmem:[#allocation10 + $0xc] sm:$0xf]
        %v1417 = vld [vmem:[#allocation10 + $0x10] sm:$0xf]
        %v1418 = vld [vmem:[#allocation10 + $0x14] sm:$0xf]
        %v1419 = vld [vmem:[#allocation10 + $0x18] sm:$0xf]
        %v1420 = vld [vmem:[#allocation10 + $0x1c] sm:$0xf]
        %v1421 = vld [vmem:[#allocation10 + $0x20] sm:$0xf]
        %v1422 = vld [vmem:[#allocation10 + $0x24] sm:$0xf]
        %v1423 = vld [vmem:[#allocation10 + $0x28] sm:$0xf]
        %v1424 = vld [vmem:[#allocation10 + $0x2c] sm:$0xf]
        %v1425 = vld [vmem:[#allocation10 + $0x30] sm:$0xf]
        %v1426 = vld [vmem:[#allocation10 + $0x34] sm:$0xf]
        %v1427 = vld [vmem:[#allocation10 + $0x38] sm:$0xf]
        %v1428 = vld [vmem:[#allocation10 + $0x3c] sm:$0xf]
        %v1429 = vld [vmem:[%s494 + $0x4] sm:$0xf]
        %v1430 = vld [vmem:[%s494 + $0x8] sm:$0xf]
        %v1431 = vld [vmem:[%s494 + $0xc] sm:$0xf]
        %v1432 = vld [vmem:[%s494 + $0x10] sm:$0xf]
        %v1433 = vld [vmem:[%s494 + $0x14] sm:$0xf]
        %v1434 = vld [vmem:[%s494 + $0x18] sm:$0xf]
        %v1435 = vld [vmem:[%s494 + $0x1c] sm:$0xf]
        %v1436 = vld [vmem:[%s494 + $0x20] sm:$0xf]
        %v1437 = vunpack.c.l.bf16 %v1429
        %v1438 = vunpack.c.l.bf16 %v1430
        %v1439 = vunpack.c.l.bf16 %v1431
        %v1440 = vunpack.c.l.bf16 %v1432
        %v1441 = vunpack.c.l.bf16 %v1433
        %v1442 = vunpack.c.l.bf16 %v1434
        %v1443 = vunpack.c.l.bf16 %v1435
        %v1444 = vunpack.c.l.bf16 %v1436
        %v1445 = vld [vmem:[%s12] sm:$0x1]
        %v1447 = vlaneseq
        %v1448 = vshrl.u32 %v1447, 7
        %v1449 = vsub.s32 0, %v1448
        %v1450 = vrot.slane %v1445, %v1449
        %vm1457 = vcmask 1044480
        %v1458 = vrot.slane %v1408, 3
        %v1459 = vrot.slane %v1409, 3
        %v1460 = vsel %vm1457, %v1458, %v1459
        %v1461 = vrot.slane %v1410, 3
        %v1462 = vsel %vm1457, %v1459, %v1461
        %v1463 = vrot.slane %v1411, 3
        %v1464 = vsel %vm1457, %v1461, %v1463
        %v1465 = vrot.slane %v1412, 3
        %v1466 = vsel %vm1457, %v1463, %v1465
        %v1487 = vunpack.c.l.b16 %v1413
        %v1488 = vunpack.c.l.b16 %v1414
        %v1489 = vunpack.c.l.b16 %v1415
        %v1490 = vunpack.c.l.b16 %v1416
        %v1491 = vunpack.c.l.b16 %v1417
        %v1492 = vunpack.c.l.b16 %v1418
        %v1493 = vunpack.c.l.b16 %v1419
        %v1494 = vunpack.c.l.b16 %v1420
        %v1495 = vunpack.c.l.b16 %v1421
        %v1496 = vunpack.c.l.b16 %v1422
        %v1497 = vunpack.c.l.b16 %v1423
        %v1498 = vunpack.c.l.b16 %v1424
        %v1499 = vunpack.c.l.b16 %v1425
        %v1500 = vunpack.c.l.b16 %v1426
        %v1501 = vunpack.c.l.b16 %v1427
        %v1502 = vunpack.c.l.b16 %v1428
        %v1503 = vpack.c.b16 %v1488, %v1487
        %v1504 = vpack.c.b16 %v1490, %v1489
        %v1505 = vpack.c.b16 %v1492, %v1491
        %v1506 = vpack.c.b16 %v1494, %v1493
        %v1507 = vpack.c.b16 %v1496, %v1495
        %v1508 = vpack.c.b16 %v1498, %v1497
        %v1509 = vpack.c.b16 %v1500, %v1499
        %v1510 = vpack.c.b16 %v1502, %v1501
        %1519 = vmatprep.subr.bf16.mxu0 0
        %1520 = vmatpush1.bf16.msra.mxu0 %v1510
        %1521 = vmatprep.subr.bf16.mxu0 0
        %1522 = vmatpush1.bf16.msra.mxu0 %v1509
        %1523 = vmatprep.subr.bf16.mxu0 0
        %1524 = vmatpush1.bf16.msra.mxu0 %v1508
        %1525 = vmatprep.subr.bf16.mxu0 0
        %1526 = vmatpush1.bf16.msra.mxu0 %v1507
        %1527 = vmatprep.subr.bf16.mxu0 0
        %1528 = vmatpush1.bf16.msra.mxu0 %v1506
        %1529 = vmatprep.subr.bf16.mxu0 0
        %1530 = vmatpush1.bf16.msra.mxu0 %v1505
        %1531 = vmatprep.subr.bf16.mxu0 0
        %1532 = vmatpush1.bf16.msra.mxu0 %v1504
        %1533 = vmatprep.subr.bf16.mxu0 0
        %1534 = vmatpush1.bf16.msra.mxu0 %v1503
        %1535 = vmatprep.subr.bf16.mxu0 0
        %1536 = vmatpush2.bf16.msra.mxu0 0
        %1537 = vmatprep.subr.bf16.mxu0 0
        %1538 = vmatpush2.bf16.msra.mxu0 0
        %1539 = vmatprep.subr.bf16.mxu0 0
        %1540 = vmatpush2.bf16.msra.mxu0 0
        %1541 = vmatprep.subr.bf16.mxu0 0
        %1542 = vmatpush2.bf16.msra.mxu0 0
        %1543 = vmatprep.subr.bf16.mxu0 0
        %1544 = vmatpush2.bf16.msra.mxu0 0
        %1545 = vmatprep.subr.bf16.mxu0 0
        %1546 = vmatpush2.bf16.msra.mxu0 0
        %1547 = vmatprep.subr.bf16.mxu0 0
        %1548 = vmatpush2.bf16.msra.mxu0 0
        %1549 = vmatprep.subr.bf16.mxu0 0
        %1550 = vmatpush2.bf16.msra.mxu0 0
        %1551 = vmatprep.mubr.bf16.mxu0 0
        %1552 = vmatmul.mubr.bf16.gmra.mxu0 %v1460
        %v1553 = vpop.f32.mrf.mxu0
        %v1554 = vadd.f32 %v1450, %v1553
        %v1555 = vpop.f32.mrf.mxu0
        %v1556 = vpop.f32.mrf.mxu0
        %v1557 = vadd.f32 %v1450, %v1556
        %v1558 = vpop.f32.mrf.mxu0
        %1559 = vmatprep.mubr.bf16.mxu0 0
        %1560 = vmatmul.mubr.bf16.gmra.mxu0 %v1462
        %v1561 = vpop.f32.mrf.mxu0
        %v1562 = vadd.f32 %v1450, %v1561
        %v1563 = vpop.f32.mrf.mxu0
        %v1564 = vpop.f32.mrf.mxu0
        %v1565 = vadd.f32 %v1450, %v1564
        %v1566 = vpop.f32.mrf.mxu0
        %1567 = vmatprep.mubr.bf16.mxu0 0
        %1568 = vmatmul.mubr.bf16.gmra.mxu0 %v1464
        %v1569 = vpop.f32.mrf.mxu0
        %v1570 = vadd.f32 %v1450, %v1569
        %v1571 = vpop.f32.mrf.mxu0
        %v1572 = vpop.f32.mrf.mxu0
        %v1573 = vadd.f32 %v1450, %v1572
        %v1574 = vpop.f32.mrf.mxu0
        %1575 = vmatprep.mubr.bf16.mxu0 0
        %1576 = vmatmul.mubr.bf16.gmra.mxu0 %v1466
        %v1577 = vpop.f32.mrf.mxu0
        %v1578 = vadd.f32 %v1450, %v1577
        %v1579 = vpop.f32.mrf.mxu0
        %v1580 = vpop.f32.mrf.mxu0
        %v1581 = vadd.f32 %v1450, %v1580
        %v1582 = vpop.f32.mrf.mxu0
        %1583 = vdwg.mxu0
        %v1584 = vadd.f32 %v1554, %v1437
        %v1585 = vadd.f32 %v1557, %v1438
        %v1586 = vadd.f32 %v1562, %v1439
        %v1587 = vadd.f32 %v1565, %v1440
        %v1588 = vadd.f32 %v1570, %v1441
        %v1589 = vadd.f32 %v1573, %v1442
        %v1590 = vadd.f32 %v1578, %v1443
        %v1591 = vadd.f32 %v1581, %v1444
        %1592 = vst [vmem:[%s438] sm:$0xff] %v1584
        %1593 = vst [vmem:[%s438 + $0x8] sm:$0xff] %v1585
        %1594 = vst [vmem:[%s438 + $0x10] sm:$0xff] %v1586
        %1595 = vst [vmem:[%s438 + $0x18] sm:$0xff] %v1587
        %1596 = vst [vmem:[%s438 + $0x20] sm:$0xff] %v1588
        %1597 = vst [vmem:[%s438 + $0x28] sm:$0xff] %v1589
        %1598 = vst [vmem:[%s438 + $0x30] sm:$0xff] %v1590
        %1599 = vst [vmem:[%s438 + $0x38] sm:$0xff] %v1591
        %s1600 = sand.u32 %s305, 1
        %s1601 = scalar_lea.sflag [#allocation9], %s1600
        %s1602 = sand.u32 %s305, 1
        %s1603 = smul.addr %s1602, 64
        %s1604 = scalar_lea.vmem [#allocation12], %s1603
        // Predicated region
        $region97: #{tpu_custom_call.1} parent=67 // pred_check
          %p1605 = pneg %p315
        $region98: #{tpu_custom_call.1} parent=67 // pred_check_branch
          %1607 = sbr.rel (%p1605) target = $region100
        $region99: #{tpu_custom_call.1} parent=67 // pred_region
          %s1608 = smul.u32 8, %s36
          %s1610 = ssub.s32 1024, 1024
          %1611 = vsyncadd %s1601, %s1610
          %s1612 = smul.addr %s35, 24
          %s1613 = sadd.s32 %s1608, %s1612
          %s1614 = smul.addr %s1613, 128
          %s1615 = scalar_lea.hbm %s13, %s1614
          %s1616 = sshll.u32 %s1604, 4
          %s1617 = int_to_ptr.vmem [resolvable:$true] %s1616
          %1622 = dma.vmem_to_hbm [thread:$0]  %s1617, 1024, %s1615, %s1601, 128, 128, 8
        $region100: #{tpu_custom_call.1} parent=67 // pred_fallthru
          _
      $region68: #{tpu_custom_call.1} parent=5 // pred_fallthru
        _
      %p1623 = scmp.le.s32.totalorder 2, %s26
      // Predicated region
      $region101: #{tpu_custom_call.1} parent=5 // pred_check
        %p1624 = pneg %p1623
      $region102: #{tpu_custom_call.1} parent=5 // pred_check_branch
        %1626 = sbr.rel (%p1624) target = $region104
      $region103: #{tpu_custom_call.1} parent=5 // pred_region
        %s1627 = ssub.s32 %s26, 2
        // Predicated region
        $region105: #{tpu_custom_call.1} parent=103 // pred_check
          %p1628 = pneg %p321
        $region106: #{tpu_custom_call.1} parent=103 // pred_check_branch
          %1630 = sbr.rel (%p1628) target = $region108
        $region107: #{tpu_custom_call.1} parent=103 // pred_region
          %s1631 = sand.u32 %s306, 1
          %s1632 = scalar_lea.sflag [#allocation9], %s1631
          %s1633 = sand.u32 %s306, 1
          %s1634 = smul.addr %s1633, 64
          %s1635 = scalar_lea.vmem [#allocation12], %s1634
          %1636 = dma.done %s1632, 1024
        $region108: #{tpu_custom_call.1} parent=103 // pred_fallthru
          _
      $region104: #{tpu_custom_call.1} parent=5 // pred_fallthru
        _
    $region6: #{tpu_custom_call.1} parent=1 // loop_footer
      %s30 = sadd.s32 1, %s26
    $region7: #{tpu_custom_call.1} parent=1 // loop_footer_branch
      %25 = sbr.rel target = $region3
    $region8: #{tpu_custom_call.1} parent=1 // loop_exit
      _
    %1637 = vsyncpa [#allocation8], 1
    %s1638 = scalar_lea.sflag [#allocation8], 1
    %1639 = vsyncpa %s1638, 1
    %1640 = vsyncpa [#allocation11], 1
    %1641 = vsyncpa [#allocation9], 1
    %s1642 = scalar_lea.sflag [#allocation9], 1
    %1643 = vsyncpa %s1642, 1
  %1644 = vsyncmov [#allocation4]
  %s1645 = vpop.sfrf %1644
  %p1646 = scmp.eq.s32.totalorder %s1645, 0
  %p1647 = pneg %p1646
  %1649 = shalt.err (%p1647)
  %s1650 = scalar_lea.sflag [#allocation4], 1
  %1651 = vsyncmov %s1650
  %s1652 = vpop.sfrf %1651
  %p1653 = scmp.eq.s32.totalorder %s1652, 0
  %p1654 = pneg %p1653
  %1656 = shalt.err (%p1654)

</llo_original>
